<compile_context>
chip_gen: v6e
topology: v6e:2x2x1
jax: 0.10.0
libtpu: 0.0.40
codegen_flags: <defaults>
</compile_context>

<pallas_src>
import functools

import jax
import jax.numpy as jnp
from jax import lax
from jax.experimental import pallas as pl
from jax.experimental.pallas import tpu as pltpu


def td_lstm_kernel(lens_ref, gx_ref, w_hh_ref, w_dense_ref, b_dense_ref,
                   out_ref, c_scr, hd_scr, *, apply_softmax, unroll):
    """Fused left/right LSTM recurrence + dense head.

    Grid = (direction d in {0: left, 1: right}, time-chunk tc).

    lens_ref:    (B, 1)  int32   valid length per batch row (current direction)
    gx_ref:      (TL, B, 4H) f32 precomputed x @ W_ih + b for this time chunk
    w_hh_ref:    (H, 4H) bf16    recurrent weight (current direction)
    w_dense_ref: (2H, P) f32
    b_dense_ref: (1, P)  f32
    out_ref:     (B, P)  f32     final logits / probabilities
    c_scr:       (B, H)  f32     running cell state (persists across chunks)
    hd_scr:      (2, B, H) f32   running hidden state per direction (== h_n)
    """
    d = pl.program_id(0)
    tc = pl.program_id(1)
    n_d = pl.num_programs(0)
    n_tc = pl.num_programs(1)

    TL, B, G = gx_ref.shape
    H = w_hh_ref.shape[0]

    # (Re)initialize the recurrent state at the first time chunk of each
    # direction (grid order: direction outer, time inner).
    @pl.when(tc == 0)
    def _():
        hd_scr[d] = jnp.zeros((B, H), jnp.float32)
        c_scr[...] = jnp.zeros_like(c_scr)

    # Hoist loop-invariant loads / broadcasts out of the recurrence.
    w_hh = w_hh_ref[...]                                       # (H, 4H) bf16
    lens_bh = jnp.broadcast_to(lens_ref[...], (B, H))          # (B, H) int32
    t_base = tc * TL

    def step(t, carry):
        h, c = carry
        # Only the recurrent matmul is on the serial path; x @ W_ih + b was
        # precomputed for the whole chunk as one large GEMM.
        gates = gx_ref[t] + jnp.dot(h.astype(w_hh.dtype), w_hh,
                                    preferred_element_type=jnp.float32)
        sig = jax.nn.sigmoid(gates)        # one EUP pass over the full (B, 4H)
        i = sig[:, 0:H]
        f = sig[:, H:2 * H]
        o = sig[:, 3 * H:4 * H]
        g = jnp.tanh(gates[:, 2 * H:3 * H])
        c_new = f * c + i * g
        h_new = o * jnp.tanh(c_new)
        # Freeze (h, c) once t >= length  ->  h_n == hidden at last valid step.
        valid = (t_base + t) < lens_bh     # (B, H) bool
        return jnp.where(valid, h_new, h), jnp.where(valid, c_new, c)

    h, c = lax.fori_loop(0, TL, step, (hd_scr[d], c_scr[...]), unroll=unroll)
    hd_scr[d] = h                           # running h_n for this direction
    c_scr[...] = c

    # Fused dense head (+ optional softmax) on the very last grid step.
    # TODO(synk): to shard the two directions across v7x's two TensorCores
    # ("parallel" direction axis), split this head into its own tiny call.
    @pl.when((d == n_d - 1) & (tc == n_tc - 1))
    def _():
        hcat = jnp.concatenate([hd_scr[0], hd_scr[1]], axis=-1)   # (B, 2H)
        logits = (jnp.dot(hcat, w_dense_ref[...],
                          preferred_element_type=jnp.float32)
                  + b_dense_ref[...])
        if apply_softmax:
            m = jnp.max(logits, axis=-1, keepdims=True)
            e = jnp.exp(logits - m)
            logits = e / jnp.sum(e, axis=-1, keepdims=True)
        out_ref[...] = logits.astype(out_ref.dtype)


def run_td_lstm(lens, gx, w_hh, w_dense, b_dense, *, time_chunk,
                apply_softmax, unroll):
    """One fused pallas_call for both LSTM directions + dense head.

    lens:    (2, B, 1) int32
    gx:      (2, L, B, 4H) f32   precomputed input-projected gates
    w_hh:    (2, H, 4H) bf16
    w_dense: (2H, P) f32
    b_dense: (1, P) f32
    """
    n_dir, L, B, G = gx.shape
    H = w_hh.shape[1]
    P = w_dense.shape[-1]

    tl = L if time_chunk is None else int(time_chunk)
    if L % tl != 0:
        raise ValueError(f"time_chunk {tl} must divide sequence length {L}")
    n_tc = L // tl

    kernel = functools.partial(td_lstm_kernel,
                               apply_softmax=apply_softmax, unroll=unroll)
    return pl.pallas_call(
        kernel,
        out_shape=jax.ShapeDtypeStruct((B, P), jnp.float32),
        grid_spec=pltpu.PrefetchScalarGridSpec(
            num_scalar_prefetch=0,
            grid=(n_dir, n_tc),
            in_specs=[
                # per-direction lengths (resident across time)
                pl.BlockSpec((pl.Squeezed(), B, 1), lambda d, t: (d, 0, 0)),
                # precomputed gate stream, blocked over time -> double buffered
                pl.BlockSpec((pl.Squeezed(), tl, B, G),
                             lambda d, t: (d, t, 0, 0)),
                # per-direction recurrent weight (resident across time)
                pl.BlockSpec((pl.Squeezed(), H, G), lambda d, t: (d, 0, 0)),
                # dense head params (same block every step)
                pl.BlockSpec((2 * H, P), lambda d, t: (0, 0)),
                pl.BlockSpec((1, P), lambda d, t: (0, 0)),
            ],
            out_specs=pl.BlockSpec((B, P), lambda d, t: (0, 0)),
            scratch_shapes=[
                pltpu.VMEM((B, H), jnp.float32),        # c
                pltpu.VMEM((n_dir, B, H), jnp.float32), # h_n per direction
            ],
        ),
        compiler_params=pltpu.CompilerParams(
            # Both axes carry state through scratch -> must be "arbitrary".
            dimension_semantics=("arbitrary", "arbitrary")),
    )(lens, gx, w_hh, w_dense, b_dense)


def td_lstm_forward(x_l, x_r, emb, params_l, params_r, w_dense, b_dense, *,
                    apply_softmax=True, time_chunk=None, unroll=True):
    """TD_LSTM.forward.  params_* = (W_ih^T (E,4H), W_hh^T (H,4H), b (4H,))."""
    B, L = x_l.shape

    # lengths = number of non-zero tokens (torch.sum(x != 0, dim=-1)).
    lens = jnp.stack([jnp.sum(x_l != 0, axis=-1),
                      jnp.sum(x_r != 0, axis=-1)]).astype(jnp.int32)
    lens = lens[:, :, None]                                   # (2, B, 1)

    # Embedding lookup (+ dropout == identity in eval mode), time-major.
    x = jnp.stack([jnp.take(emb, x_l, axis=0),
                   jnp.take(emb, x_r, axis=0)])               # (2, B, L, E)
    x_tm = jnp.transpose(x, (0, 2, 1, 3))                     # (2, L, B, E)

    w_ih = jnp.stack([params_l[0], params_r[0]])              # (2, E, 4H)
    w_hh = jnp.stack([params_l[1], params_r[1]])              # (2, H, 4H)
    bias = jnp.stack([params_l[2], params_r[2]])              # (2, 4H)

    # Hoisted input projection: one big GEMM over all timesteps & directions
    # (bf16 operands, f32 accumulation), bias folded in here so it vanishes
    # from the serial recurrence entirely.
    gx = jnp.einsum('dlbe,deg->dlbg',
                    x_tm.astype(jnp.bfloat16), w_ih.astype(jnp.bfloat16),
                    preferred_element_type=jnp.float32)
    gx = gx + bias[:, None, None, :]                          # (2, L, B, 4H) f32

    # Fused recurrence + dense head (h_n dropout is identity in eval mode).
    return run_td_lstm(lens, gx, w_hh.astype(jnp.bfloat16), w_dense, b_dense,
                       time_chunk=time_chunk, apply_softmax=apply_softmax,
                       unroll=unroll)


if __name__ == "__main__":
    key = jax.random.PRNGKey(0)
    B, L, V, E, H, P = 2, 8, 50, 32, 32, 3  # batch, seq, vocab, embed, hidden, polarities
    ks = jax.random.split(key, 8)

    # deterministic "pretrained" embedding matrix
    emb = jax.random.normal(ks[0], (V, E), jnp.float32) * 0.1

    # token ids with trailing 0-padding to exercise variable lengths
    def make_tokens(k, lengths):
        ids = jax.random.randint(k, (B, L), 1, V)
        pos = jnp.arange(L)[None, :]
        return jnp.where(pos < jnp.asarray(lengths)[:, None], ids, 0).astype(jnp.int32)

    x_l = make_tokens(ks[1], [6, 8])
    x_r = make_tokens(ks[2], [5, 7])

    def lstm_params(k):
        k1, k2, k3, k4 = jax.random.split(k, 4)
        s = 1.0 / jnp.sqrt(jnp.float32(H))
        w_ih = jax.random.uniform(k1, (4 * H, E), jnp.float32, -s, s)
        w_hh = jax.random.uniform(k2, (4 * H, H), jnp.float32, -s, s)
        b_ih = jax.random.uniform(k3, (4 * H,), jnp.float32, -s, s)
        b_hh = jax.random.uniform(k4, (4 * H,), jnp.float32, -s, s)
        return w_ih.T, w_hh.T, b_ih + b_hh   # PyTorch i,f,g,o gate order

    params_l = lstm_params(ks[3])
    params_r = lstm_params(ks[4])

    w_dense = jax.random.uniform(ks[5], (2 * H, P), jnp.float32, -0.1, 0.1)
    b_dense = jax.random.uniform(ks[6], (1, P), jnp.float32, -0.1, 0.1)

    fwd = jax.jit(functools.partial(td_lstm_forward, apply_softmax=True))
    out = fwd(x_l, x_r, emb, params_l, params_r, w_dense, b_dense)
    out = jax.block_until_ready(out)
    assert out.shape == (B, P)
    assert bool(jnp.all(jnp.isfinite(out)))
    print("KERNEL_OK")
</pallas_src>

<mosaic_0001>
module attributes {stable_mosaic.version = 11 : i64} {
  func.func @td_lstm_kernel(%arg0: i32, %arg1: i32, %arg2: memref<1x2x1xi32, #tpu.memory_space<vmem>>, %arg3: memref<1x8x2x128xf32, #tpu.memory_space<vmem>>, %arg4: memref<1x32x128xbf16, #tpu.memory_space<vmem>>, %arg5: memref<64x3xf32, #tpu.memory_space<vmem>>, %arg6: memref<1x3xf32, #tpu.memory_space<vmem>>, %arg7: memref<2x3xf32, #tpu.memory_space<vmem>>, %arg8: memref<2x32xf32, #tpu.memory_space<vmem>>, %arg9: memref<2x2x32xf32, #tpu.memory_space<vmem>>) attributes {dimension_semantics = [#tpu.dimension_semantics<arbitrary>, #tpu.dimension_semantics<arbitrary>], iteration_bounds = array<i64: 2, 1>, scalar_prefetch = 0 : i64, scratch_operands = 2 : i64, tpu.core_type = #tpu.core_type<tc>, window_params = [{transform_indices = @transform_0, window_bounds = array<i64: 1, 2, 1>}, {transform_indices = @transform_1, window_bounds = array<i64: 1, 8, 2, 128>}, {transform_indices = @transform_2, window_bounds = array<i64: 1, 32, 128>}, {pipeline_mode = #tpu.pipeline_mode<synchronous>, transform_indices = @transform_3, window_bounds = array<i64: 64, 3>}, {pipeline_mode = #tpu.pipeline_mode<synchronous>, transform_indices = @transform_4, window_bounds = array<i64: 1, 3>}, {pipeline_mode = #tpu.pipeline_mode<synchronous>, transform_indices = @transform_5, window_bounds = array<i64: 2, 3>}]} {
    %c0_i32 = arith.constant 0 : i32
    %0 = arith.cmpi eq, %arg1, %c0_i32 : i32
    %1 = arith.extui %0 : i1 to i32
    %c0_i32_0 = arith.constant 0 : i32
    %2 = arith.cmpi ne, %1, %c0_i32_0 : i32
    scf.if %2 {
      %cst_58 = arith.constant 0.000000e+00 : f32
      %232 = vector.broadcast %cst_58 : f32 to vector<2x32xf32>
      %233 = arith.index_cast %arg0 : i32 to index
      %c0_59 = arith.constant 0 : index
      %c0_60 = arith.constant 0 : index
      %234 = vector.load %arg9[%233, %c0_59, %c0_60] : memref<2x2x32xf32, #tpu.memory_space<vmem>>, vector<1x2x32xf32>
      %235 = vector.shape_cast %234 : vector<1x2x32xf32> to vector<2x32xf32>
      %236 = vector.shape_cast %232 : vector<2x32xf32> to vector<1x2x32xf32>
      tpu.vector_store %arg9[%233, %c0_59, %c0_60], %236 {strides = array<i32>} : memref<2x2x32xf32, #tpu.memory_space<vmem>>, vector<1x2x32xf32>,
      %cst_61 = arith.constant 0.000000e+00 : f32
      %237 = vector.broadcast %cst_61 : f32 to vector<2x32xf32>
      %c0_62 = arith.constant 0 : index
      %c0_63 = arith.constant 0 : index
      %238 = vector.load %arg8[%c0_62, %c0_63] : memref<2x32xf32, #tpu.memory_space<vmem>>, vector<2x32xf32>
      tpu.vector_store %arg8[%c0_62, %c0_63], %237 {strides = array<i32>} : memref<2x32xf32, #tpu.memory_space<vmem>>, vector<2x32xf32>,
    } else {
    }
    %c0 = arith.constant 0 : index
    %c0_1 = arith.constant 0 : index
    %c0_2 = arith.constant 0 : index
    %3 = vector.load %arg4[%c0, %c0_1, %c0_2] : memref<1x32x128xbf16, #tpu.memory_space<vmem>>, vector<1x32x128xbf16>
    %4 = vector.shape_cast %3 : vector<1x32x128xbf16> to vector<32x128xbf16>
    %c0_3 = arith.constant 0 : index
    %c0_4 = arith.constant 0 : index
    %c0_5 = arith.constant 0 : index
    %5 = vector.load %arg2[%c0_3, %c0_4, %c0_5] : memref<1x2x1xi32, #tpu.memory_space<vmem>>, vector<1x2x1xi32>
    %6 = vector.shape_cast %5 : vector<1x2x1xi32> to vector<2x1xi32>
    %7 = vector.shape_cast %6 : vector<2x1xi32> to vector<2x1xi32>
    %8 = vector.broadcast %7 : vector<2x1xi32> to vector<2x32xi32>
    %c8_i32 = arith.constant 8 : i32
    %9 = arith.muli %arg1, %c8_i32 : i32
    %10 = arith.index_cast %arg0 : i32 to index
    %c0_6 = arith.constant 0 : index
    %c0_7 = arith.constant 0 : index
    %11 = vector.load %arg9[%10, %c0_6, %c0_7] : memref<2x2x32xf32, #tpu.memory_space<vmem>>, vector<1x2x32xf32>
    %12 = vector.shape_cast %11 : vector<1x2x32xf32> to vector<2x32xf32>
    %c0_8 = arith.constant 0 : index
    %c0_9 = arith.constant 0 : index
    %13 = vector.load %arg8[%c0_8, %c0_9] : memref<2x32xf32, #tpu.memory_space<vmem>>, vector<2x32xf32>
    %c0_i32_10 = arith.constant 0 : i32
    %c0_11 = arith.constant 0 : index
    %14 = arith.index_cast %c0_i32_10 : i32 to index
    %c0_12 = arith.constant 0 : index
    %c0_13 = arith.constant 0 : index
    %15 = vector.load %arg3[%c0_11, %14, %c0_12, %c0_13] : memref<1x8x2x128xf32, #tpu.memory_space<vmem>>, vector<1x1x2x128xf32>
    %16 = vector.shape_cast %15 : vector<1x1x2x128xf32> to vector<2x128xf32>
    %17 = arith.truncf %12 : vector<2x32xf32> to vector<2x32xbf16>
    %cst = arith.constant dense<0.000000e+00> : vector<2x128xf32>
    %18 = tpu.matmul %17, %4, %cst {dimension_numbers = #tpu.dot_dimension_numbers<[1], [0], [0], [1], [0, 0, 1, 1], [], []>} : vector<2x32xbf16>, vector<32x128xbf16>, vector<2x128xf32> -> vector<2x128xf32>
    %19 = arith.addf %16, %18 : vector<2x128xf32>
    %20 = arith.negf %19 : vector<2x128xf32>
    %21 = math.exp %20 : vector<2x128xf32>
    %cst_14 = arith.constant 1.000000e+00 : f32
    %22 = vector.broadcast %cst_14 : f32 to vector<2x128xf32>
    %23 = arith.addf %22, %21 : vector<2x128xf32>
    %24 = arith.divf %22, %23 : vector<2x128xf32>
    %25 = vector.extract_strided_slice %24 {offsets = [0, 0], sizes = [2, 32], strides = [1, 1]} : vector<2x128xf32> to vector<2x32xf32>
    %26 = vector.extract_strided_slice %24 {offsets = [0, 32], sizes = [2, 32], strides = [1, 1]} : vector<2x128xf32> to vector<2x32xf32>
    %27 = vector.extract_strided_slice %24 {offsets = [0, 96], sizes = [2, 32], strides = [1, 1]} : vector<2x128xf32> to vector<2x32xf32>
    %28 = vector.extract_strided_slice %19 {offsets = [0, 64], sizes = [2, 32], strides = [1, 1]} : vector<2x128xf32> to vector<2x32xf32>
    %29 = math.tanh %28 : vector<2x32xf32>
    %30 = arith.mulf %26, %13 : vector<2x32xf32>
    %31 = arith.mulf %25, %29 : vector<2x32xf32>
    %32 = arith.addf %30, %31 : vector<2x32xf32>
    %33 = math.tanh %32 : vector<2x32xf32>
    %34 = arith.mulf %27, %33 : vector<2x32xf32>
    %35 = arith.addi %9, %c0_i32_10 : i32
    %36 = vector.broadcast %35 : i32 to vector<2x32xi32>
    %37 = arith.cmpi slt, %36, %8 : vector<2x32xi32>
    %38 = arith.select %37, %34, %12 : vector<2x32xi1>, vector<2x32xf32>
    %39 = arith.select %37, %32, %13 : vector<2x32xi1>, vector<2x32xf32>
    %c1_i32 = arith.constant 1 : i32
    %c0_15 = arith.constant 0 : index
    %40 = arith.index_cast %c1_i32 : i32 to index
    %c0_16 = arith.constant 0 : index
    %c0_17 = arith.constant 0 : index
    %41 = vector.load %arg3[%c0_15, %40, %c0_16, %c0_17] : memref<1x8x2x128xf32, #tpu.memory_space<vmem>>, vector<1x1x2x128xf32>
    %42 = vector.shape_cast %41 : vector<1x1x2x128xf32> to vector<2x128xf32>
    %43 = arith.truncf %38 : vector<2x32xf32> to vector<2x32xbf16>
    %cst_18 = arith.constant dense<0.000000e+00> : vector<2x128xf32>
    %44 = tpu.matmul %43, %4, %cst_18 {dimension_numbers = #tpu.dot_dimension_numbers<[1], [0], [0], [1], [0, 0, 1, 1], [], []>} : vector<2x32xbf16>, vector<32x128xbf16>, vector<2x128xf32> -> vector<2x128xf32>
    %45 = arith.addf %42, %44 : vector<2x128xf32>
    %46 = arith.negf %45 : vector<2x128xf32>
    %47 = math.exp %46 : vector<2x128xf32>
    %cst_19 = arith.constant 1.000000e+00 : f32
    %48 = vector.broadcast %cst_19 : f32 to vector<2x128xf32>
    %49 = arith.addf %48, %47 : vector<2x128xf32>
    %50 = arith.divf %48, %49 : vector<2x128xf32>
    %51 = vector.extract_strided_slice %50 {offsets = [0, 0], sizes = [2, 32], strides = [1, 1]} : vector<2x128xf32> to vector<2x32xf32>
    %52 = vector.extract_strided_slice %50 {offsets = [0, 32], sizes = [2, 32], strides = [1, 1]} : vector<2x128xf32> to vector<2x32xf32>
    %53 = vector.extract_strided_slice %50 {offsets = [0, 96], sizes = [2, 32], strides = [1, 1]} : vector<2x128xf32> to vector<2x32xf32>
    %54 = vector.extract_strided_slice %45 {offsets = [0, 64], sizes = [2, 32], strides = [1, 1]} : vector<2x128xf32> to vector<2x32xf32>
    %55 = math.tanh %54 : vector<2x32xf32>
    %56 = arith.mulf %52, %39 : vector<2x32xf32>
    %57 = arith.mulf %51, %55 : vector<2x32xf32>
    %58 = arith.addf %56, %57 : vector<2x32xf32>
    %59 = math.tanh %58 : vector<2x32xf32>
    %60 = arith.mulf %53, %59 : vector<2x32xf32>
    %61 = arith.addi %9, %c1_i32 : i32
    %62 = vector.broadcast %61 : i32 to vector<2x32xi32>
    %63 = arith.cmpi slt, %62, %8 : vector<2x32xi32>
    %64 = arith.select %63, %60, %38 : vector<2x32xi1>, vector<2x32xf32>
    %65 = arith.select %63, %58, %39 : vector<2x32xi1>, vector<2x32xf32>
    %c2_i32 = arith.constant 2 : i32
    %c0_20 = arith.constant 0 : index
    %66 = arith.index_cast %c2_i32 : i32 to index
    %c0_21 = arith.constant 0 : index
    %c0_22 = arith.constant 0 : index
    %67 = vector.load %arg3[%c0_20, %66, %c0_21, %c0_22] : memref<1x8x2x128xf32, #tpu.memory_space<vmem>>, vector<1x1x2x128xf32>
    %68 = vector.shape_cast %67 : vector<1x1x2x128xf32> to vector<2x128xf32>
    %69 = arith.truncf %64 : vector<2x32xf32> to vector<2x32xbf16>
    %cst_23 = arith.constant dense<0.000000e+00> : vector<2x128xf32>
    %70 = tpu.matmul %69, %4, %cst_23 {dimension_numbers = #tpu.dot_dimension_numbers<[1], [0], [0], [1], [0, 0, 1, 1], [], []>} : vector<2x32xbf16>, vector<32x128xbf16>, vector<2x128xf32> -> vector<2x128xf32>
    %71 = arith.addf %68, %70 : vector<2x128xf32>
    %72 = arith.negf %71 : vector<2x128xf32>
    %73 = math.exp %72 : vector<2x128xf32>
    %cst_24 = arith.constant 1.000000e+00 : f32
    %74 = vector.broadcast %cst_24 : f32 to vector<2x128xf32>
    %75 = arith.addf %74, %73 : vector<2x128xf32>
    %76 = arith.divf %74, %75 : vector<2x128xf32>
    %77 = vector.extract_strided_slice %76 {offsets = [0, 0], sizes = [2, 32], strides = [1, 1]} : vector<2x128xf32> to vector<2x32xf32>
    %78 = vector.extract_strided_slice %76 {offsets = [0, 32], sizes = [2, 32], strides = [1, 1]} : vector<2x128xf32> to vector<2x32xf32>
    %79 = vector.extract_strided_slice %76 {offsets = [0, 96], sizes = [2, 32], strides = [1, 1]} : vector<2x128xf32> to vector<2x32xf32>
    %80 = vector.extract_strided_slice %71 {offsets = [0, 64], sizes = [2, 32], strides = [1, 1]} : vector<2x128xf32> to vector<2x32xf32>
    %81 = math.tanh %80 : vector<2x32xf32>
    %82 = arith.mulf %78, %65 : vector<2x32xf32>
    %83 = arith.mulf %77, %81 : vector<2x32xf32>
    %84 = arith.addf %82, %83 : vector<2x32xf32>
    %85 = math.tanh %84 : vector<2x32xf32>
    %86 = arith.mulf %79, %85 : vector<2x32xf32>
    %87 = arith.addi %9, %c2_i32 : i32
    %88 = vector.broadcast %87 : i32 to vector<2x32xi32>
    %89 = arith.cmpi slt, %88, %8 : vector<2x32xi32>
    %90 = arith.select %89, %86, %64 : vector<2x32xi1>, vector<2x32xf32>
    %91 = arith.select %89, %84, %65 : vector<2x32xi1>, vector<2x32xf32>
    %c3_i32 = arith.constant 3 : i32
    %c0_25 = arith.constant 0 : index
    %92 = arith.index_cast %c3_i32 : i32 to index
    %c0_26 = arith.constant 0 : index
    %c0_27 = arith.constant 0 : index
    %93 = vector.load %arg3[%c0_25, %92, %c0_26, %c0_27] : memref<1x8x2x128xf32, #tpu.memory_space<vmem>>, vector<1x1x2x128xf32>
    %94 = vector.shape_cast %93 : vector<1x1x2x128xf32> to vector<2x128xf32>
    %95 = arith.truncf %90 : vector<2x32xf32> to vector<2x32xbf16>
    %cst_28 = arith.constant dense<0.000000e+00> : vector<2x128xf32>
    %96 = tpu.matmul %95, %4, %cst_28 {dimension_numbers = #tpu.dot_dimension_numbers<[1], [0], [0], [1], [0, 0, 1, 1], [], []>} : vector<2x32xbf16>, vector<32x128xbf16>, vector<2x128xf32> -> vector<2x128xf32>
    %97 = arith.addf %94, %96 : vector<2x128xf32>
    %98 = arith.negf %97 : vector<2x128xf32>
    %99 = math.exp %98 : vector<2x128xf32>
    %cst_29 = arith.constant 1.000000e+00 : f32
    %100 = vector.broadcast %cst_29 : f32 to vector<2x128xf32>
    %101 = arith.addf %100, %99 : vector<2x128xf32>
    %102 = arith.divf %100, %101 : vector<2x128xf32>
    %103 = vector.extract_strided_slice %102 {offsets = [0, 0], sizes = [2, 32], strides = [1, 1]} : vector<2x128xf32> to vector<2x32xf32>
    %104 = vector.extract_strided_slice %102 {offsets = [0, 32], sizes = [2, 32], strides = [1, 1]} : vector<2x128xf32> to vector<2x32xf32>
    %105 = vector.extract_strided_slice %102 {offsets = [0, 96], sizes = [2, 32], strides = [1, 1]} : vector<2x128xf32> to vector<2x32xf32>
    %106 = vector.extract_strided_slice %97 {offsets = [0, 64], sizes = [2, 32], strides = [1, 1]} : vector<2x128xf32> to vector<2x32xf32>
    %107 = math.tanh %106 : vector<2x32xf32>
    %108 = arith.mulf %104, %91 : vector<2x32xf32>
    %109 = arith.mulf %103, %107 : vector<2x32xf32>
    %110 = arith.addf %108, %109 : vector<2x32xf32>
    %111 = math.tanh %110 : vector<2x32xf32>
    %112 = arith.mulf %105, %111 : vector<2x32xf32>
    %113 = arith.addi %9, %c3_i32 : i32
    %114 = vector.broadcast %113 : i32 to vector<2x32xi32>
    %115 = arith.cmpi slt, %114, %8 : vector<2x32xi32>
    %116 = arith.select %115, %112, %90 : vector<2x32xi1>, vector<2x32xf32>
    %117 = arith.select %115, %110, %91 : vector<2x32xi1>, vector<2x32xf32>
    %c4_i32 = arith.constant 4 : i32
    %c0_30 = arith.constant 0 : index
    %118 = arith.index_cast %c4_i32 : i32 to index
    %c0_31 = arith.constant 0 : index
    %c0_32 = arith.constant 0 : index
    %119 = vector.load %arg3[%c0_30, %118, %c0_31, %c0_32] : memref<1x8x2x128xf32, #tpu.memory_space<vmem>>, vector<1x1x2x128xf32>
    %120 = vector.shape_cast %119 : vector<1x1x2x128xf32> to vector<2x128xf32>
    %121 = arith.truncf %116 : vector<2x32xf32> to vector<2x32xbf16>
    %cst_33 = arith.constant dense<0.000000e+00> : vector<2x128xf32>
    %122 = tpu.matmul %121, %4, %cst_33 {dimension_numbers = #tpu.dot_dimension_numbers<[1], [0], [0], [1], [0, 0, 1, 1], [], []>} : vector<2x32xbf16>, vector<32x128xbf16>, vector<2x128xf32> -> vector<2x128xf32>
    %123 = arith.addf %120, %122 : vector<2x128xf32>
    %124 = arith.negf %123 : vector<2x128xf32>
    %125 = math.exp %124 : vector<2x128xf32>
    %cst_34 = arith.constant 1.000000e+00 : f32
    %126 = vector.broadcast %cst_34 : f32 to vector<2x128xf32>
    %127 = arith.addf %126, %125 : vector<2x128xf32>
    %128 = arith.divf %126, %127 : vector<2x128xf32>
    %129 = vector.extract_strided_slice %128 {offsets = [0, 0], sizes = [2, 32], strides = [1, 1]} : vector<2x128xf32> to vector<2x32xf32>
    %130 = vector.extract_strided_slice %128 {offsets = [0, 32], sizes = [2, 32], strides = [1, 1]} : vector<2x128xf32> to vector<2x32xf32>
    %131 = vector.extract_strided_slice %128 {offsets = [0, 96], sizes = [2, 32], strides = [1, 1]} : vector<2x128xf32> to vector<2x32xf32>
    %132 = vector.extract_strided_slice %123 {offsets = [0, 64], sizes = [2, 32], strides = [1, 1]} : vector<2x128xf32> to vector<2x32xf32>
    %133 = math.tanh %132 : vector<2x32xf32>
    %134 = arith.mulf %130, %117 : vector<2x32xf32>
    %135 = arith.mulf %129, %133 : vector<2x32xf32>
    %136 = arith.addf %134, %135 : vector<2x32xf32>
    %137 = math.tanh %136 : vector<2x32xf32>
    %138 = arith.mulf %131, %137 : vector<2x32xf32>
    %139 = arith.addi %9, %c4_i32 : i32
    %140 = vector.broadcast %139 : i32 to vector<2x32xi32>
    %141 = arith.cmpi slt, %140, %8 : vector<2x32xi32>
    %142 = arith.select %141, %138, %116 : vector<2x32xi1>, vector<2x32xf32>
    %143 = arith.select %141, %136, %117 : vector<2x32xi1>, vector<2x32xf32>
    %c5_i32 = arith.constant 5 : i32
    %c0_35 = arith.constant 0 : index
    %144 = arith.index_cast %c5_i32 : i32 to index
    %c0_36 = arith.constant 0 : index
    %c0_37 = arith.constant 0 : index
    %145 = vector.load %arg3[%c0_35, %144, %c0_36, %c0_37] : memref<1x8x2x128xf32, #tpu.memory_space<vmem>>, vector<1x1x2x128xf32>
    %146 = vector.shape_cast %145 : vector<1x1x2x128xf32> to vector<2x128xf32>
    %147 = arith.truncf %142 : vector<2x32xf32> to vector<2x32xbf16>
    %cst_38 = arith.constant dense<0.000000e+00> : vector<2x128xf32>
    %148 = tpu.matmul %147, %4, %cst_38 {dimension_numbers = #tpu.dot_dimension_numbers<[1], [0], [0], [1], [0, 0, 1, 1], [], []>} : vector<2x32xbf16>, vector<32x128xbf16>, vector<2x128xf32> -> vector<2x128xf32>
    %149 = arith.addf %146, %148 : vector<2x128xf32>
    %150 = arith.negf %149 : vector<2x128xf32>
    %151 = math.exp %150 : vector<2x128xf32>
    %cst_39 = arith.constant 1.000000e+00 : f32
    %152 = vector.broadcast %cst_39 : f32 to vector<2x128xf32>
    %153 = arith.addf %152, %151 : vector<2x128xf32>
    %154 = arith.divf %152, %153 : vector<2x128xf32>
    %155 = vector.extract_strided_slice %154 {offsets = [0, 0], sizes = [2, 32], strides = [1, 1]} : vector<2x128xf32> to vector<2x32xf32>
    %156 = vector.extract_strided_slice %154 {offsets = [0, 32], sizes = [2, 32], strides = [1, 1]} : vector<2x128xf32> to vector<2x32xf32>
    %157 = vector.extract_strided_slice %154 {offsets = [0, 96], sizes = [2, 32], strides = [1, 1]} : vector<2x128xf32> to vector<2x32xf32>
    %158 = vector.extract_strided_slice %149 {offsets = [0, 64], sizes = [2, 32], strides = [1, 1]} : vector<2x128xf32> to vector<2x32xf32>
    %159 = math.tanh %158 : vector<2x32xf32>
    %160 = arith.mulf %156, %143 : vector<2x32xf32>
    %161 = arith.mulf %155, %159 : vector<2x32xf32>
    %162 = arith.addf %160, %161 : vector<2x32xf32>
    %163 = math.tanh %162 : vector<2x32xf32>
    %164 = arith.mulf %157, %163 : vector<2x32xf32>
    %165 = arith.addi %9, %c5_i32 : i32
    %166 = vector.broadcast %165 : i32 to vector<2x32xi32>
    %167 = arith.cmpi slt, %166, %8 : vector<2x32xi32>
    %168 = arith.select %167, %164, %142 : vector<2x32xi1>, vector<2x32xf32>
    %169 = arith.select %167, %162, %143 : vector<2x32xi1>, vector<2x32xf32>
    %c6_i32 = arith.constant 6 : i32
    %c0_40 = arith.constant 0 : index
    %170 = arith.index_cast %c6_i32 : i32 to index
    %c0_41 = arith.constant 0 : index
    %c0_42 = arith.constant 0 : index
    %171 = vector.load %arg3[%c0_40, %170, %c0_41, %c0_42] : memref<1x8x2x128xf32, #tpu.memory_space<vmem>>, vector<1x1x2x128xf32>
    %172 = vector.shape_cast %171 : vector<1x1x2x128xf32> to vector<2x128xf32>
    %173 = arith.truncf %168 : vector<2x32xf32> to vector<2x32xbf16>
    %cst_43 = arith.constant dense<0.000000e+00> : vector<2x128xf32>
    %174 = tpu.matmul %173, %4, %cst_43 {dimension_numbers = #tpu.dot_dimension_numbers<[1], [0], [0], [1], [0, 0, 1, 1], [], []>} : vector<2x32xbf16>, vector<32x128xbf16>, vector<2x128xf32> -> vector<2x128xf32>
    %175 = arith.addf %172, %174 : vector<2x128xf32>
    %176 = arith.negf %175 : vector<2x128xf32>
    %177 = math.exp %176 : vector<2x128xf32>
    %cst_44 = arith.constant 1.000000e+00 : f32
    %178 = vector.broadcast %cst_44 : f32 to vector<2x128xf32>
    %179 = arith.addf %178, %177 : vector<2x128xf32>
    %180 = arith.divf %178, %179 : vector<2x128xf32>
    %181 = vector.extract_strided_slice %180 {offsets = [0, 0], sizes = [2, 32], strides = [1, 1]} : vector<2x128xf32> to vector<2x32xf32>
    %182 = vector.extract_strided_slice %180 {offsets = [0, 32], sizes = [2, 32], strides = [1, 1]} : vector<2x128xf32> to vector<2x32xf32>
    %183 = vector.extract_strided_slice %180 {offsets = [0, 96], sizes = [2, 32], strides = [1, 1]} : vector<2x128xf32> to vector<2x32xf32>
    %184 = vector.extract_strided_slice %175 {offsets = [0, 64], sizes = [2, 32], strides = [1, 1]} : vector<2x128xf32> to vector<2x32xf32>
    %185 = math.tanh %184 : vector<2x32xf32>
    %186 = arith.mulf %182, %169 : vector<2x32xf32>
    %187 = arith.mulf %181, %185 : vector<2x32xf32>
    %188 = arith.addf %186, %187 : vector<2x32xf32>
    %189 = math.tanh %188 : vector<2x32xf32>
    %190 = arith.mulf %183, %189 : vector<2x32xf32>
    %191 = arith.addi %9, %c6_i32 : i32
    %192 = vector.broadcast %191 : i32 to vector<2x32xi32>
    %193 = arith.cmpi slt, %192, %8 : vector<2x32xi32>
    %194 = arith.select %193, %190, %168 : vector<2x32xi1>, vector<2x32xf32>
    %195 = arith.select %193, %188, %169 : vector<2x32xi1>, vector<2x32xf32>
    %c7_i32 = arith.constant 7 : i32
    %c0_45 = arith.constant 0 : index
    %196 = arith.index_cast %c7_i32 : i32 to index
    %c0_46 = arith.constant 0 : index
    %c0_47 = arith.constant 0 : index
    %197 = vector.load %arg3[%c0_45, %196, %c0_46, %c0_47] : memref<1x8x2x128xf32, #tpu.memory_space<vmem>>, vector<1x1x2x128xf32>
    %198 = vector.shape_cast %197 : vector<1x1x2x128xf32> to vector<2x128xf32>
    %199 = arith.truncf %194 : vector<2x32xf32> to vector<2x32xbf16>
    %cst_48 = arith.constant dense<0.000000e+00> : vector<2x128xf32>
    %200 = tpu.matmul %199, %4, %cst_48 {dimension_numbers = #tpu.dot_dimension_numbers<[1], [0], [0], [1], [0, 0, 1, 1], [], []>} : vector<2x32xbf16>, vector<32x128xbf16>, vector<2x128xf32> -> vector<2x128xf32>
    %201 = arith.addf %198, %200 : vector<2x128xf32>
    %202 = arith.negf %201 : vector<2x128xf32>
    %203 = math.exp %202 : vector<2x128xf32>
    %cst_49 = arith.constant 1.000000e+00 : f32
    %204 = vector.broadcast %cst_49 : f32 to vector<2x128xf32>
    %205 = arith.addf %204, %203 : vector<2x128xf32>
    %206 = arith.divf %204, %205 : vector<2x128xf32>
    %207 = vector.extract_strided_slice %206 {offsets = [0, 0], sizes = [2, 32], strides = [1, 1]} : vector<2x128xf32> to vector<2x32xf32>
    %208 = vector.extract_strided_slice %206 {offsets = [0, 32], sizes = [2, 32], strides = [1, 1]} : vector<2x128xf32> to vector<2x32xf32>
    %209 = vector.extract_strided_slice %206 {offsets = [0, 96], sizes = [2, 32], strides = [1, 1]} : vector<2x128xf32> to vector<2x32xf32>
    %210 = vector.extract_strided_slice %201 {offsets = [0, 64], sizes = [2, 32], strides = [1, 1]} : vector<2x128xf32> to vector<2x32xf32>
    %211 = math.tanh %210 : vector<2x32xf32>
    %212 = arith.mulf %208, %195 : vector<2x32xf32>
    %213 = arith.mulf %207, %211 : vector<2x32xf32>
    %214 = arith.addf %212, %213 : vector<2x32xf32>
    %215 = math.tanh %214 : vector<2x32xf32>
    %216 = arith.mulf %209, %215 : vector<2x32xf32>
    %217 = arith.addi %9, %c7_i32 : i32
    %218 = vector.broadcast %217 : i32 to vector<2x32xi32>
    %219 = arith.cmpi slt, %218, %8 : vector<2x32xi32>
    %220 = arith.select %219, %216, %194 : vector<2x32xi1>, vector<2x32xf32>
    %221 = arith.select %219, %214, %195 : vector<2x32xi1>, vector<2x32xf32>
    %c8_i32_50 = arith.constant 8 : i32
    %222 = arith.index_cast %arg0 : i32 to index
    %c0_51 = arith.constant 0 : index
    %c0_52 = arith.constant 0 : index
    %223 = vector.load %arg9[%222, %c0_51, %c0_52] : memref<2x2x32xf32, #tpu.memory_space<vmem>>, vector<1x2x32xf32>
    %224 = vector.shape_cast %223 : vector<1x2x32xf32> to vector<2x32xf32>
    %225 = vector.shape_cast %220 : vector<2x32xf32> to vector<1x2x32xf32>
    tpu.vector_store %arg9[%222, %c0_51, %c0_52], %225 {strides = array<i32>} : memref<2x2x32xf32, #tpu.memory_space<vmem>>, vector<1x2x32xf32>,
    %c0_53 = arith.constant 0 : index
    %c0_54 = arith.constant 0 : index
    %226 = vector.load %arg8[%c0_53, %c0_54] : memref<2x32xf32, #tpu.memory_space<vmem>>, vector<2x32xf32>
    tpu.vector_store %arg8[%c0_53, %c0_54], %221 {strides = array<i32>} : memref<2x32xf32, #tpu.memory_space<vmem>>, vector<2x32xf32>,
    %c1_i32_55 = arith.constant 1 : i32
    %227 = arith.cmpi eq, %arg0, %c1_i32_55 : i32
    %c0_i32_56 = arith.constant 0 : i32
    %228 = arith.cmpi eq, %arg1, %c0_i32_56 : i32
    %229 = arith.andi %227, %228 : i1
    %230 = arith.extui %229 : i1 to i32
    %c0_i32_57 = arith.constant 0 : i32
    %231 = arith.cmpi ne, %230, %c0_i32_57 : i32
    scf.if %231 {
      %c0_58 = arith.constant 0 : index
      %c0_59 = arith.constant 0 : index
      %c0_60 = arith.constant 0 : index
      %232 = vector.load %arg9[%c0_58, %c0_59, %c0_60] : memref<2x2x32xf32, #tpu.memory_space<vmem>>, vector<1x2x32xf32>
      %233 = vector.shape_cast %232 : vector<1x2x32xf32> to vector<2x32xf32>
      %c1 = arith.constant 1 : index
      %c0_61 = arith.constant 0 : index
      %c0_62 = arith.constant 0 : index
      %234 = vector.load %arg9[%c1, %c0_61, %c0_62] : memref<2x2x32xf32, #tpu.memory_space<vmem>>, vector<1x2x32xf32>
      %235 = vector.shape_cast %234 : vector<1x2x32xf32> to vector<2x32xf32>
      %236 = tpu.concatenate %233, %235 in 1 : vector<2x32xf32>, vector<2x32xf32> -> vector<2x64xf32>
      %c0_63 = arith.constant 0 : index
      %c0_64 = arith.constant 0 : index
      %237 = vector.load %arg5[%c0_63, %c0_64] : memref<64x3xf32, #tpu.memory_space<vmem>>, vector<64x3xf32>
      %cst_65 = arith.constant dense<0.000000e+00> : vector<2x3xf32>
      %238 = tpu.matmul %236, %237, %cst_65 {dimension_numbers = #tpu.dot_dimension_numbers<[1], [0], [0], [1], [0, 0, 1, 1], [], []>} : vector<2x64xf32>, vector<64x3xf32>, vector<2x3xf32> -> vector<2x3xf32>
      %c0_66 = arith.constant 0 : index
      %c0_67 = arith.constant 0 : index
      %239 = vector.load %arg6[%c0_66, %c0_67] : memref<1x3xf32, #tpu.memory_space<vmem>>, vector<1x3xf32>
      %240 = vector.broadcast %239 : vector<1x3xf32> to vector<2x3xf32>
      %241 = arith.addf %238, %240 : vector<2x3xf32>
      %cst_68 = arith.constant dense<0xFF800000> : vector<2xf32>
      %242 = vector.multi_reduction <maximumf>, %241, %cst_68 [1] : vector<2x3xf32> to vector<2xf32>
      %243 = vector.shape_cast %242 : vector<2xf32> to vector<2x1xf32>
      %244 = vector.broadcast %243 : vector<2x1xf32> to vector<2x3xf32>
      %245 = arith.subf %241, %244 : vector<2x3xf32>
      %246 = math.exp %245 : vector<2x3xf32>
      %cst_69 = arith.constant dense<0.000000e+00> : vector<2xf32>
      %247 = vector.multi_reduction <add>, %246, %cst_69 [1] : vector<2x3xf32> to vector<2xf32>
      %248 = vector.shape_cast %247 : vector<2xf32> to vector<2x1xf32>
      %249 = vector.broadcast %248 : vector<2x1xf32> to vector<2x3xf32>
      %250 = arith.divf %246, %249 : vector<2x3xf32>
      %c0_70 = arith.constant 0 : index
      %c0_71 = arith.constant 0 : index
      %251 = vector.load %arg7[%c0_70, %c0_71] : memref<2x3xf32, #tpu.memory_space<vmem>>, vector<2x3xf32>
      tpu.vector_store %arg7[%c0_70, %c0_71], %250 {strides = array<i32>} : memref<2x3xf32, #tpu.memory_space<vmem>>, vector<2x3xf32>,
    } else {
    }
    return
  }
  func.func @transform_0(%arg0: i32, %arg1: i32) -> (i32, i32, i32) {
    %c0_i32 = arith.constant 0 : i32
    %c0_i32_0 = arith.constant 0 : i32
    %c0_i32_1 = arith.constant 0 : i32
    return %arg0, %c0_i32, %c0_i32_0 : i32, i32, i32
  }
  func.func @transform_1(%arg0: i32, %arg1: i32) -> (i32, i32, i32, i32) {
    %c0_i32 = arith.constant 0 : i32
    %c0_i32_0 = arith.constant 0 : i32
    %c0_i32_1 = arith.constant 0 : i32
    return %arg0, %arg1, %c0_i32, %c0_i32_0 : i32, i32, i32, i32
  }
  func.func @transform_2(%arg0: i32, %arg1: i32) -> (i32, i32, i32) {
    %c0_i32 = arith.constant 0 : i32
    %c0_i32_0 = arith.constant 0 : i32
    %c0_i32_1 = arith.constant 0 : i32
    return %arg0, %c0_i32, %c0_i32_0 : i32, i32, i32
  }
  func.func @transform_3(%arg0: i32, %arg1: i32) -> (i32, i32) {
    %c0_i32 = arith.constant 0 : i32
    %c0_i32_0 = arith.constant 0 : i32
    %c0_i32_1 = arith.constant 0 : i32
    return %c0_i32, %c0_i32_0 : i32, i32
  }
  func.func @transform_4(%arg0: i32, %arg1: i32) -> (i32, i32) {
    %c0_i32 = arith.constant 0 : i32
    %c0_i32_0 = arith.constant 0 : i32
    %c0_i32_1 = arith.constant 0 : i32
    return %c0_i32, %c0_i32_0 : i32, i32
  }
  func.func @transform_5(%arg0: i32, %arg1: i32) -> (i32, i32) {
    %c0_i32 = arith.constant 0 : i32
    %c0_i32_0 = arith.constant 0 : i32
    %c0_i32_1 = arith.constant 0 : i32
    return %c0_i32, %c0_i32_0 : i32, i32
  }
}

</mosaic_0001>

<llo_original>
// kernel: td_lstm_forward.1
$region0: #{td_lstm_forward.1}
  #allocation0 [shape = 'u32[]', space=smem, size = 0x4, offset = 0x4, fixed_abs, tag = 'smem constant byte address 0x4 - core index']
  #allocation1 [shape = 'u32[144,128]{1,0:T(1,128)}', space=vmem, size = 0x12000, scoped, tag = 'internal scratch']
  #allocation2 [shape = 'f32[2,32]{1,0:T(2,128)}', space=vmem, size = 0x400, scoped, tag = 'scratch operand']
  #allocation3 [shape = 'f32[2,2,32]{2,1,0:T(2,128)}', space=vmem, size = 0x800, scoped, tag = 'scratch operand']
  %s0 = inlined_call_operand.vmem [shape: s32[2,2,1], index: 0, kind: input, shape index: {}]
  %s1 = inlined_call_operand.vmem [shape: f32[2,8,2,128], index: 1, kind: input, shape index: {}]
  %s2 = inlined_call_operand.vmem [shape: bf16[2,32,128], index: 2, kind: input, shape index: {}]
  %s3 = inlined_call_operand.vmem [shape: f32[64,3], index: 3, kind: input, shape index: {}]
  %s4 = inlined_call_operand.vmem [shape: f32[1,3], index: 4, kind: input, shape index: {}]
  %s5 = inlined_call_operand.hbm [shape: f32[2,3], index: 5, kind: output, shape index: {}]
  %s6 = sld [smem:[#allocation0]]
  $region61: #{td_lstm_forward.1} parent=0
    _
  %s8 = ssub.s32 1, %s6
  %s9 = scalar_select 0, %s8, %s6
  $region1: #{td_lstm_forward.1} parent=0
    #allocation4 [shape = 'u8[1024]{0}', space=vmem, size = 0x400, scoped, tag = 'output window, operand 0, single buffered']
    #allocation5 [shape = 's32[2]{0}', space=sflag, size = 0x8, scoped, tag = 'scoped memory for td_lstm_forward.1']
    %10 = vsyncpa [#allocation5], 0
    loop: start=0, step=1, limit=4
    $region2: #{td_lstm_forward.1} parent=1 // loop_pre_header
      _
    $region3: #{td_lstm_forward.1} parent=1 // loop_header
      %s12 = sphi 0, %s16
      %p13 = scmp.ge.s32.totalorder %s12, 4
      %s19 = sphi 0, %s31
      %s20 = sphi 0, %s27
      %s21 = sphi 0, %s19
      %s22 = sphi 0, %s20
      %s23 = sphi 0, %s21
      %s24 = sphi 0, %s22
      %s34 = sphi 0, %s36
      %s37 = sphi 0, %s34
      %s38 = sphi 0, %s37
      %s54 = sphi 0, %s38
      %s62 = sphi 0, %s64
      %s65 = sphi 0, %s62
      %s66 = sphi 0, %s65
      %s82 = sphi 0, %s66
      %s88 = sphi 0, %s90
      %s91 = sphi 0, %s88
      %s92 = sphi 0, %s91
      %s108 = sphi 0, %s92
      %s112 = sphi 0, %s112
      %s114 = sphi 0, %s112
      %s115 = sphi 0, %s114
      %s129 = sphi 0, %s115
      %s133 = sphi 0, %s133
      %s135 = sphi 0, %s133
      %s136 = sphi 0, %s135
      %s150 = sphi 0, %s136
      %s154 = sphi 0, %s154
      %s156 = sphi 0, %s154
      %s157 = sphi 0, %s156
      %s171 = sphi 0, %s157
    $region4: #{td_lstm_forward.1} parent=1 // loop_header_branch
      %15 = sbr.rel (%p13) target = $region8
    $region5: #{td_lstm_forward.1} parent=1 // loop_body
      %s17 = ssub.s32 %s12, 1
      %s18 = ssub.s32 %s12, 2
      %s25 = sadd.s32 1, %s20
      %p26 = scmp.ge.s32.totalorder %s25, 1
      %s27 = scalar_select %p26, 0, %s25
      %s28 = sadd.s32 1, %s19
      %s29 = scalar_select %p26, %s28, %s19
      %p30 = scmp.ge.s32.totalorder %s29, 2
      %s31 = scalar_select %p30, 0, %s29
      %s32 = ssub.s32 %s19, %s31
      %p33 = scmp.eq.s32.totalorder %s32, 0
      %s35 = sadd.s32 %s34, 1
      %s36 = scalar_select %p33, %s34, %s35
      %p39 = pneg %p33
      %p40 = scmp.eq.s32.totalorder %s12, 1
      %p41 = por %p39, %p40
      %p42 = scmp.ne.s32.totalorder %s34, %s37
      %p43 = scmp.eq.s32.totalorder %s12, 0
      %p44 = por %p42, %p43
      %p45 = scmp.ne.s32.totalorder %s34, %s37
      %p46 = scmp.eq.s32.totalorder %s17, 1
      %p47 = por %p45, %p46
      %p48 = scmp.ne.s32.totalorder %s37, %s38
      %p49 = scmp.eq.s32.totalorder %s17, 0
      %p50 = por %p48, %p49
      %p51 = scmp.ne.s32.totalorder %s37, %s38
      %p52 = scmp.eq.s32.totalorder %s18, 1
      %p53 = por %p51, %p52
      %p55 = scmp.ne.s32.totalorder %s38, %s54
      %p56 = scmp.eq.s32.totalorder %s18, 0
      %p57 = por %p55, %p56
      %s58 = ssub.s32 %s19, %s31
      %s59 = ssub.s32 %s20, %s27
      %s60 = sor.u32 %s58, %s59
      %p61 = scmp.eq.s32.totalorder %s60, 0
      %s63 = sadd.s32 %s62, 1
      %s64 = scalar_select %p61, %s62, %s63
      %p67 = pneg %p61
      %p68 = scmp.eq.s32.totalorder %s12, 1
      %p69 = por %p67, %p68
      %p70 = scmp.ne.s32.totalorder %s62, %s65
      %p71 = scmp.eq.s32.totalorder %s12, 0
      %p72 = por %p70, %p71
      %p73 = scmp.ne.s32.totalorder %s62, %s65
      %p74 = scmp.eq.s32.totalorder %s17, 1
      %p75 = por %p73, %p74
      %p76 = scmp.ne.s32.totalorder %s65, %s66
      %p77 = scmp.eq.s32.totalorder %s17, 0
      %p78 = por %p76, %p77
      %p79 = scmp.ne.s32.totalorder %s65, %s66
      %p80 = scmp.eq.s32.totalorder %s18, 1
      %p81 = por %p79, %p80
      %p83 = scmp.ne.s32.totalorder %s66, %s82
      %p84 = scmp.eq.s32.totalorder %s18, 0
      %p85 = por %p83, %p84
      %s86 = ssub.s32 %s19, %s31
      %p87 = scmp.eq.s32.totalorder %s86, 0
      %s89 = sadd.s32 %s88, 1
      %s90 = scalar_select %p87, %s88, %s89
      %p93 = pneg %p87
      %p94 = scmp.eq.s32.totalorder %s12, 1
      %p95 = por %p93, %p94
      %p96 = scmp.ne.s32.totalorder %s88, %s91
      %p97 = scmp.eq.s32.totalorder %s12, 0
      %p98 = por %p96, %p97
      %p99 = scmp.ne.s32.totalorder %s88, %s91
      %p100 = scmp.eq.s32.totalorder %s17, 1
      %p101 = por %p99, %p100
      %p102 = scmp.ne.s32.totalorder %s91, %s92
      %p103 = scmp.eq.s32.totalorder %s17, 0
      %p104 = por %p102, %p103
      %p105 = scmp.ne.s32.totalorder %s91, %s92
      %p106 = scmp.eq.s32.totalorder %s18, 1
      %p107 = por %p105, %p106
      %p109 = scmp.ne.s32.totalorder %s92, %s108
      %p110 = scmp.eq.s32.totalorder %s18, 0
      %p111 = por %p109, %p110
      %s113 = sadd.s32 %s112, 1
      %p116 = scmp.eq.s32.totalorder %s12, 1
      %p117 = scmp.ne.s32.totalorder %s112, %s114
      %p118 = scmp.eq.s32.totalorder %s12, 0
      %p119 = por %p117, %p118
      %p120 = scmp.ne.s32.totalorder %s112, %s114
      %p121 = scmp.eq.s32.totalorder %s17, 1
      %p122 = por %p120, %p121
      %p123 = scmp.ne.s32.totalorder %s114, %s115
      %p124 = scmp.eq.s32.totalorder %s17, 0
      %p125 = por %p123, %p124
      %p126 = scmp.ne.s32.totalorder %s114, %s115
      %p127 = scmp.eq.s32.totalorder %s18, 1
      %p128 = por %p126, %p127
      %p130 = scmp.ne.s32.totalorder %s115, %s129
      %p131 = scmp.eq.s32.totalorder %s18, 0
      %p132 = por %p130, %p131
      %s134 = sadd.s32 %s133, 1
      %p137 = scmp.eq.s32.totalorder %s12, 1
      %p138 = scmp.ne.s32.totalorder %s133, %s135
      %p139 = scmp.eq.s32.totalorder %s12, 0
      %p140 = por %p138, %p139
      %p141 = scmp.ne.s32.totalorder %s133, %s135
      %p142 = scmp.eq.s32.totalorder %s17, 1
      %p143 = por %p141, %p142
      %p144 = scmp.ne.s32.totalorder %s135, %s136
      %p145 = scmp.eq.s32.totalorder %s17, 0
      %p146 = por %p144, %p145
      %p147 = scmp.ne.s32.totalorder %s135, %s136
      %p148 = scmp.eq.s32.totalorder %s18, 1
      %p149 = por %p147, %p148
      %p151 = scmp.ne.s32.totalorder %s136, %s150
      %p152 = scmp.eq.s32.totalorder %s18, 0
      %p153 = por %p151, %p152
      %s155 = sadd.s32 %s154, 1
      %p158 = scmp.eq.s32.totalorder %s12, 1
      %p159 = scmp.ne.s32.totalorder %s154, %s156
      %p160 = scmp.eq.s32.totalorder %s12, 0
      %p161 = por %p159, %p160
      %p162 = scmp.ne.s32.totalorder %s154, %s156
      %p163 = scmp.eq.s32.totalorder %s17, 1
      %p164 = por %p162, %p163
      %p165 = scmp.ne.s32.totalorder %s156, %s157
      %p166 = scmp.eq.s32.totalorder %s17, 0
      %p167 = por %p165, %p166
      %p168 = scmp.ne.s32.totalorder %s156, %s157
      %p169 = scmp.eq.s32.totalorder %s18, 1
      %p170 = por %p168, %p169
      %p172 = scmp.ne.s32.totalorder %s157, %s171
      %p173 = scmp.eq.s32.totalorder %s18, 0
      %p174 = por %p172, %p173
      %p175 = scmp.le.s32.totalorder 1, %s12
      %p176 = scmp.lt.s32.totalorder %s12, 3
      %p177 = pnand %p175, %p176
      %p178 = pneg %p177
      // Predicated region
      $region9: #{td_lstm_forward.1} parent=5 // pred_check
        _
      $region10: #{td_lstm_forward.1} parent=5 // pred_check_branch
        %180 = sbr.rel (%p177) target = $region12
      $region11: #{td_lstm_forward.1} parent=5 // pred_region
        %s181 = ssub.s32 %s12, 1
        // Predicated region
        $region13: #{td_lstm_forward.1} parent=11 // pred_check
          %p182 = pneg %p125
        $region14: #{td_lstm_forward.1} parent=11 // pred_check_branch
          %184 = sbr.rel (%p182) target = $region16
        $region15: #{td_lstm_forward.1} parent=11 // pred_region
          _
        $region16: #{td_lstm_forward.1} parent=11 // pred_fallthru
          _
        // Predicated region
        $region17: #{td_lstm_forward.1} parent=11 // pred_check
          %p185 = pneg %p146
        $region18: #{td_lstm_forward.1} parent=11 // pred_check_branch
          %187 = sbr.rel (%p185) target = $region20
        $region19: #{td_lstm_forward.1} parent=11 // pred_region
          _
        $region20: #{td_lstm_forward.1} parent=11 // pred_fallthru
          _
      $region12: #{td_lstm_forward.1} parent=5 // pred_fallthru
        _
      %p188 = scmp.lt.s32.totalorder %s12, 2
      // Predicated region
      $region21: #{td_lstm_forward.1} parent=5 // pred_check
        %p189 = pneg %p188
      $region22: #{td_lstm_forward.1} parent=5 // pred_check_branch
        %191 = sbr.rel (%p189) target = $region24
      $region23: #{td_lstm_forward.1} parent=5 // pred_region
        // Predicated region
        $region25: #{td_lstm_forward.1} parent=23 // pred_check
          %p192 = pneg %p44
        $region26: #{td_lstm_forward.1} parent=23 // pred_check_branch
          %194 = sbr.rel (%p192) target = $region28
        $region27: #{td_lstm_forward.1} parent=23 // pred_region
          %p195 = scmp.lt.s32.totalorder %s19, 1
          %s196 = scalar_select %p195, %s19, 1
          %s197 = smul.addr %s196, 2
          %s198 = scalar_lea.vmem %s0, %s197
        $region28: #{td_lstm_forward.1} parent=23 // pred_fallthru
          _
        // Predicated region
        $region29: #{td_lstm_forward.1} parent=23 // pred_check
          %p199 = pneg %p72
        $region30: #{td_lstm_forward.1} parent=23 // pred_check_branch
          %201 = sbr.rel (%p199) target = $region32
        $region31: #{td_lstm_forward.1} parent=23 // pred_region
          %s202 = smul.u32 8, %s20
          %p203 = scmp.lt.s32.totalorder %s19, 1
          %s204 = scalar_select %p203, %s19, 1
          %p205 = scmp.lt.s32.totalorder %s202, 7
          %s206 = scalar_select %p205, %s202, 7
          %s207 = smul.addr %s204, 8
          %s208 = sadd.s32 %s206, %s207
          %s209 = smul.addr %s208, 2
          %s210 = scalar_lea.vmem %s1, %s209
          %s211 = smul.u32 8, %s20
        $region32: #{td_lstm_forward.1} parent=23 // pred_fallthru
          _
        // Predicated region
        $region33: #{td_lstm_forward.1} parent=23 // pred_check
          %p212 = pneg %p98
        $region34: #{td_lstm_forward.1} parent=23 // pred_check_branch
          %214 = sbr.rel (%p212) target = $region36
        $region35: #{td_lstm_forward.1} parent=23 // pred_region
          %p215 = scmp.lt.s32.totalorder %s19, 1
          %s216 = scalar_select %p215, %s19, 1
          %s217 = smul.addr %s216, 4
          %s218 = smul.addr %s217, 4
          %s219 = scalar_lea.vmem %s2, %s218
        $region36: #{td_lstm_forward.1} parent=23 // pred_fallthru
          _
      $region24: #{td_lstm_forward.1} parent=5 // pred_fallthru
        _
      %p220 = scmp.le.s32.totalorder 1, %s12
      %p221 = scmp.lt.s32.totalorder %s12, 3
      %p222 = pnand %p220, %p221
      %p223 = pneg %p222
      // Predicated region
      $region37: #{td_lstm_forward.1} parent=5 // pred_check
        _
      $region38: #{td_lstm_forward.1} parent=5 // pred_check_branch
        %225 = sbr.rel (%p222) target = $region40
      $region39: #{td_lstm_forward.1} parent=5 // pred_region
        %s226 = ssub.s32 %s12, 1
        %p227 = scmp.lt.s32.totalorder %s21, 1
        %s228 = scalar_select %p227, %s21, 1
        %s229 = smul.addr %s228, 2
        %s230 = scalar_lea.vmem %s0, %s229
        %p231 = pneg %p50
        %p232 = pneg %p47
        %s233 = smul.u32 8, %s22
        %p234 = scmp.lt.s32.totalorder %s21, 1
        %s235 = scalar_select %p234, %s21, 1
        %p236 = scmp.lt.s32.totalorder %s233, 7
        %s237 = scalar_select %p236, %s233, 7
        %s238 = smul.addr %s235, 8
        %s239 = sadd.s32 %s237, %s238
        %s240 = smul.addr %s239, 2
        %s241 = scalar_lea.vmem %s1, %s240
        %p242 = pneg %p78
        %p243 = pneg %p75
        %p244 = scmp.lt.s32.totalorder %s21, 1
        %s245 = scalar_select %p244, %s21, 1
        %s246 = smul.addr %s245, 4
        %s247 = smul.addr %s246, 4
        %s248 = scalar_lea.vmem %s2, %s247
        %p249 = pneg %p104
        %p250 = pneg %p101
        %p251 = pneg %p125
        %p252 = pneg %p122
        %p253 = pneg %p146
        %p254 = pneg %p143
        %p255 = pneg %p167
        %p256 = pneg %p164
        %p257 = scmp.lt.s32.totalorder %s21, 1
        %s258 = scalar_select %p257, %s21, 1
        %s259 = smul.addr %s258, 2
        %s260 = scalar_lea.vmem %s0, %s259
        %s261 = smul.u32 8, %s22
        %p262 = scmp.lt.s32.totalorder %s21, 1
        %s263 = scalar_select %p262, %s21, 1
        %p264 = scmp.lt.s32.totalorder %s261, 7
        %s265 = scalar_select %p264, %s261, 7
        %s266 = smul.addr %s263, 8
        %s267 = sadd.s32 %s265, %s266
        %s268 = smul.addr %s267, 2
        %s269 = scalar_lea.vmem %s1, %s268
        %s270 = smul.u32 8, %s22
        %p271 = scmp.lt.s32.totalorder %s21, 1
        %s272 = scalar_select %p271, %s21, 1
        %s273 = smul.addr %s272, 4
        %s274 = smul.addr %s273, 4
        %s275 = scalar_lea.vmem %s2, %s274
        %p277 = scmp.eq.s32.totalorder %s22, 0
        // Predicated region
        $region41: #{td_lstm_forward.1} parent=39 // pred_check
          %p278 = pneg %p277
        $region42: #{td_lstm_forward.1} parent=39 // pred_check_branch
          %280 = sbr.rel (%p278) target = $region44
        $region43: #{td_lstm_forward.1} parent=39 // pred_region
          %s281 = smul.u32 %s21, 2
          %s282 = scalar_lea.vmem [#allocation3], %s281
          %vm283 = vcmask 254976
          %284 = vst.msk [vmem:[%s282] sm:$0x3] %vm283, 0.0
          %285 = vst.msk [vmem:[#allocation2] sm:$0x3] %vm283, 0.0
        $region44: #{td_lstm_forward.1} parent=39 // pred_fallthru
          _
        %v286 = vld [vmem:[%s275] sm:$0xf]
        %v287 = vld [vmem:[%s275 + $0x4] sm:$0xf]
        %v288 = vld [vmem:[%s275 + $0x8] sm:$0xf]
        %v289 = vld [vmem:[%s275 + $0xc] sm:$0xf]
        %v290 = vld [vmem:[%s260] sm:$0x3]
        %291 = vset.pattern.permute.xlu0 0
        %292 = vperm.xlu0 %291, %v290
        %v293 = vpop.permute.xlu0 %292
        %s294 = smul.u32 %s22, 8
        %s295 = smul.u32 %s21, 2
        %s296 = scalar_lea.vmem [#allocation3], %s295
        %v297 = vld [vmem:[%s296] sm:$0x3]
        %v298 = vld [vmem:[#allocation2] sm:$0x3]
        %v299 = vld [vmem:[%s269] sm:$0x3]
        %v300 = vpack.c.bf16 %v297, %v297
        %v305 = vunpack.c.l.b16 %v286
        %v306 = vunpack.c.l.b16 %v287
        %v307 = vunpack.c.l.b16 %v288
        %v308 = vunpack.c.l.b16 %v289
        %v309 = vpack.c.b16 %v306, %v305
        %v310 = vpack.c.b16 %v308, %v307
        %vm313 = vcmask 261120
        %v315 = vsel %vm313, %v300, 0
        %317 = vmatprep.subr.bf16.mxu0 0
        %318 = vmatpush1.bf16.msra.mxu0 0
        %319 = vmatprep.subr.bf16.mxu0 0
        %320 = vmatpush1.bf16.msra.mxu0 0
        %321 = vmatprep.subr.bf16.mxu0 0
        %322 = vmatpush1.bf16.msra.mxu0 0
        %323 = vmatprep.subr.bf16.mxu0 0
        %324 = vmatpush1.bf16.msra.mxu0 0
        %325 = vmatprep.subr.bf16.mxu0 0
        %326 = vmatpush1.bf16.msra.mxu0 0
        %327 = vmatprep.subr.bf16.mxu0 0
        %328 = vmatpush1.bf16.msra.mxu0 0
        %329 = vmatprep.subr.bf16.mxu0 0
        %330 = vmatpush1.bf16.msra.mxu0 %v310
        %331 = vmatprep.subr.bf16.mxu0 0
        %332 = vmatpush1.bf16.msra.mxu0 %v309
        %333 = vmatprep.subr.bf16.mxu0 0
        %334 = vmatpush2.bf16.msra.mxu0 0
        %335 = vmatprep.subr.bf16.mxu0 0
        %336 = vmatpush2.bf16.msra.mxu0 0
        %337 = vmatprep.subr.bf16.mxu0 0
        %338 = vmatpush2.bf16.msra.mxu0 0
        %339 = vmatprep.subr.bf16.mxu0 0
        %340 = vmatpush2.bf16.msra.mxu0 0
        %341 = vmatprep.subr.bf16.mxu0 0
        %342 = vmatpush2.bf16.msra.mxu0 0
        %343 = vmatprep.subr.bf16.mxu0 0
        %344 = vmatpush2.bf16.msra.mxu0 0
        %345 = vmatprep.subr.bf16.mxu0 0
        %346 = vmatpush2.bf16.msra.mxu0 0
        %347 = vmatprep.subr.bf16.mxu0 0
        %348 = vmatpush2.bf16.msra.mxu0 0
        %349 = vmatprep.mubr.bf16.mxu0 0
        %350 = vmatmul.mubr.bf16.gmra.mxu0 %v315
        %v351 = vpop.f32.mrf.mxu0
        %v352 = vadd.f32 0.0, %v351
        %v353 = vpop.f32.mrf.mxu0
        %v354 = vpop.f32.mrf.mxu0
        %v355 = vpop.f32.mrf.mxu0
        %356 = vdwg.mxu0
        %v357 = vadd.f32 %v299, %v352
        %v358 = vxor.u32 %v357, 2147483648
        %v359 = vmul.f32 %v358, 1.442695
        %v360 = vpow.pop %v359
        %v361 = vadd.f32 %v360, 1.0
        %v362 = vrcp.pop %v361
        %v363 = vmul.f32 1.0, %v362
        %v364 = vtanh.pop %v357
        %366 = vrot.lane.b32.xlu0 %v298, 32
        %v367 = vpop.permute.xlu0 %366
        %v369 = vmul.f32 %v363, %v367
        %371 = vrot.lane.b32.xlu0 %v364, 64
        %v372 = vpop.permute.xlu0 %371
        %v374 = vmul.f32 %v363, %v372
        %376 = vrot.lane.b32.xlu0 %v374, 32
        %v377 = vpop.permute.xlu0 %376
        %v379 = vadd.f32 %v369, %v377
        %v380 = vtanh.pop %v379
        %382 = vrot.lane.b32.xlu0 %v380, 64
        %v383 = vpop.permute.xlu0 %382
        %v385 = vmul.f32 %v363, %v383
        %v386 = vstv %s294
        %vm387 = vcmp.lt.s32.totalorder %v386, %v293
        %389 = vrot.lane.b32.xlu0 %v297, 96
        %v390 = vpop.permute.xlu0 %389
        %v392 = vsel %vm387, %v385, %v390
        %v393 = vsel %vm387, %v379, %v367
        %s394 = scalar_lea.vmem %s269, 2
        %v395 = vld [vmem:[%s394] sm:$0x3]
        %v396 = vpack.c.bf16 %v392, %v392
        %398 = vrot.lane.b32.xlu0 %v396, 32
        %v399 = vpop.permute.xlu0 %398
        %v401 = vsel %vm313, %v399, 0
        %403 = vmatprep.subr.bf16.mxu0 0
        %404 = vmatpush1.bf16.msra.mxu0 0
        %405 = vmatprep.subr.bf16.mxu0 0
        %406 = vmatpush1.bf16.msra.mxu0 0
        %407 = vmatprep.subr.bf16.mxu0 0
        %408 = vmatpush1.bf16.msra.mxu0 0
        %409 = vmatprep.subr.bf16.mxu0 0
        %410 = vmatpush1.bf16.msra.mxu0 0
        %411 = vmatprep.subr.bf16.mxu0 0
        %412 = vmatpush1.bf16.msra.mxu0 0
        %413 = vmatprep.subr.bf16.mxu0 0
        %414 = vmatpush1.bf16.msra.mxu0 0
        %415 = vmatprep.subr.bf16.mxu0 0
        %416 = vmatpush1.bf16.msra.mxu0 %v310
        %417 = vmatprep.subr.bf16.mxu0 0
        %418 = vmatpush1.bf16.msra.mxu0 %v309
        %419 = vmatprep.subr.bf16.mxu0 0
        %420 = vmatpush2.bf16.msra.mxu0 0
        %421 = vmatprep.subr.bf16.mxu0 0
        %422 = vmatpush2.bf16.msra.mxu0 0
        %423 = vmatprep.subr.bf16.mxu0 0
        %424 = vmatpush2.bf16.msra.mxu0 0
        %425 = vmatprep.subr.bf16.mxu0 0
        %426 = vmatpush2.bf16.msra.mxu0 0
        %427 = vmatprep.subr.bf16.mxu0 0
        %428 = vmatpush2.bf16.msra.mxu0 0
        %429 = vmatprep.subr.bf16.mxu0 0
        %430 = vmatpush2.bf16.msra.mxu0 0
        %431 = vmatprep.subr.bf16.mxu0 0
        %432 = vmatpush2.bf16.msra.mxu0 0
        %433 = vmatprep.subr.bf16.mxu0 0
        %434 = vmatpush2.bf16.msra.mxu0 0
        %435 = vmatprep.mubr.bf16.mxu0 0
        %436 = vmatmul.mubr.bf16.gmra.mxu0 %v401
        %v437 = vpop.f32.mrf.mxu0
        %v438 = vadd.f32 0.0, %v437
        %v439 = vpop.f32.mrf.mxu0
        %v440 = vpop.f32.mrf.mxu0
        %v441 = vpop.f32.mrf.mxu0
        %442 = vdwg.mxu0
        %v443 = vadd.f32 %v395, %v438
        %v444 = vxor.u32 %v443, 2147483648
        %v445 = vmul.f32 %v444, 1.442695
        %v446 = vpow.pop %v445
        %v447 = vadd.f32 %v446, 1.0
        %v448 = vrcp.pop %v447
        %v449 = vmul.f32 1.0, %v448
        %v450 = vtanh.pop %v443
        %v451 = vmul.f32 %v449, %v393
        %453 = vrot.lane.b32.xlu0 %v450, 64
        %v454 = vpop.permute.xlu0 %453
        %v456 = vmul.f32 %v449, %v454
        %458 = vrot.lane.b32.xlu0 %v456, 32
        %v459 = vpop.permute.xlu0 %458
        %v461 = vadd.f32 %v451, %v459
        %v462 = vtanh.pop %v461
        %464 = vrot.lane.b32.xlu0 %v462, 64
        %v465 = vpop.permute.xlu0 %464
        %v467 = vmul.f32 %v449, %v465
        %s468 = sadd.s32 %s294, 1
        %v469 = vstv %s468
        %vm470 = vcmp.lt.s32.totalorder %v469, %v293
        %v471 = vsel %vm470, %v467, %v392
        %v472 = vsel %vm470, %v461, %v393
        %s473 = scalar_lea.vmem %s269, 4
        %v474 = vld [vmem:[%s473] sm:$0x3]
        %v475 = vpack.c.bf16 %v471, %v471
        %477 = vrot.lane.b32.xlu0 %v475, 32
        %v478 = vpop.permute.xlu0 %477
        %v480 = vsel %vm313, %v478, 0
        %482 = vmatprep.subr.bf16.mxu0 0
        %483 = vmatpush1.bf16.msra.mxu0 0
        %484 = vmatprep.subr.bf16.mxu0 0
        %485 = vmatpush1.bf16.msra.mxu0 0
        %486 = vmatprep.subr.bf16.mxu0 0
        %487 = vmatpush1.bf16.msra.mxu0 0
        %488 = vmatprep.subr.bf16.mxu0 0
        %489 = vmatpush1.bf16.msra.mxu0 0
        %490 = vmatprep.subr.bf16.mxu0 0
        %491 = vmatpush1.bf16.msra.mxu0 0
        %492 = vmatprep.subr.bf16.mxu0 0
        %493 = vmatpush1.bf16.msra.mxu0 0
        %494 = vmatprep.subr.bf16.mxu0 0
        %495 = vmatpush1.bf16.msra.mxu0 %v310
        %496 = vmatprep.subr.bf16.mxu0 0
        %497 = vmatpush1.bf16.msra.mxu0 %v309
        %498 = vmatprep.subr.bf16.mxu0 0
        %499 = vmatpush2.bf16.msra.mxu0 0
        %500 = vmatprep.subr.bf16.mxu0 0
        %501 = vmatpush2.bf16.msra.mxu0 0
        %502 = vmatprep.subr.bf16.mxu0 0
        %503 = vmatpush2.bf16.msra.mxu0 0
        %504 = vmatprep.subr.bf16.mxu0 0
        %505 = vmatpush2.bf16.msra.mxu0 0
        %506 = vmatprep.subr.bf16.mxu0 0
        %507 = vmatpush2.bf16.msra.mxu0 0
        %508 = vmatprep.subr.bf16.mxu0 0
        %509 = vmatpush2.bf16.msra.mxu0 0
        %510 = vmatprep.subr.bf16.mxu0 0
        %511 = vmatpush2.bf16.msra.mxu0 0
        %512 = vmatprep.subr.bf16.mxu0 0
        %513 = vmatpush2.bf16.msra.mxu0 0
        %514 = vmatprep.mubr.bf16.mxu0 0
        %515 = vmatmul.mubr.bf16.gmra.mxu0 %v480
        %v516 = vpop.f32.mrf.mxu0
        %v517 = vadd.f32 0.0, %v516
        %v518 = vpop.f32.mrf.mxu0
        %v519 = vpop.f32.mrf.mxu0
        %v520 = vpop.f32.mrf.mxu0
        %521 = vdwg.mxu0
        %v522 = vadd.f32 %v474, %v517
        %v523 = vxor.u32 %v522, 2147483648
        %v524 = vmul.f32 %v523, 1.442695
        %v525 = vpow.pop %v524
        %v526 = vadd.f32 %v525, 1.0
        %v527 = vrcp.pop %v526
        %v528 = vmul.f32 1.0, %v527
        %v529 = vtanh.pop %v522
        %v530 = vmul.f32 %v528, %v472
        %532 = vrot.lane.b32.xlu0 %v529, 64
        %v533 = vpop.permute.xlu0 %532
        %v535 = vmul.f32 %v528, %v533
        %537 = vrot.lane.b32.xlu0 %v535, 32
        %v538 = vpop.permute.xlu0 %537
        %v540 = vadd.f32 %v530, %v538
        %v541 = vtanh.pop %v540
        %543 = vrot.lane.b32.xlu0 %v541, 64
        %v544 = vpop.permute.xlu0 %543
        %v546 = vmul.f32 %v528, %v544
        %s547 = sadd.s32 %s294, 2
        %v548 = vstv %s547
        %vm549 = vcmp.lt.s32.totalorder %v548, %v293
        %v550 = vsel %vm549, %v546, %v471
        %v551 = vsel %vm549, %v540, %v472
        %s552 = scalar_lea.vmem %s269, 6
        %v553 = vld [vmem:[%s552] sm:$0x3]
        %v554 = vpack.c.bf16 %v550, %v550
        %556 = vrot.lane.b32.xlu0 %v554, 32
        %v557 = vpop.permute.xlu0 %556
        %v559 = vsel %vm313, %v557, 0
        %561 = vmatprep.subr.bf16.mxu0 0
        %562 = vmatpush1.bf16.msra.mxu0 0
        %563 = vmatprep.subr.bf16.mxu0 0
        %564 = vmatpush1.bf16.msra.mxu0 0
        %565 = vmatprep.subr.bf16.mxu0 0
        %566 = vmatpush1.bf16.msra.mxu0 0
        %567 = vmatprep.subr.bf16.mxu0 0
        %568 = vmatpush1.bf16.msra.mxu0 0
        %569 = vmatprep.subr.bf16.mxu0 0
        %570 = vmatpush1.bf16.msra.mxu0 0
        %571 = vmatprep.subr.bf16.mxu0 0
        %572 = vmatpush1.bf16.msra.mxu0 0
        %573 = vmatprep.subr.bf16.mxu0 0
        %574 = vmatpush1.bf16.msra.mxu0 %v310
        %575 = vmatprep.subr.bf16.mxu0 0
        %576 = vmatpush1.bf16.msra.mxu0 %v309
        %577 = vmatprep.subr.bf16.mxu0 0
        %578 = vmatpush2.bf16.msra.mxu0 0
        %579 = vmatprep.subr.bf16.mxu0 0
        %580 = vmatpush2.bf16.msra.mxu0 0
        %581 = vmatprep.subr.bf16.mxu0 0
        %582 = vmatpush2.bf16.msra.mxu0 0
        %583 = vmatprep.subr.bf16.mxu0 0
        %584 = vmatpush2.bf16.msra.mxu0 0
        %585 = vmatprep.subr.bf16.mxu0 0
        %586 = vmatpush2.bf16.msra.mxu0 0
        %587 = vmatprep.subr.bf16.mxu0 0
        %588 = vmatpush2.bf16.msra.mxu0 0
        %589 = vmatprep.subr.bf16.mxu0 0
        %590 = vmatpush2.bf16.msra.mxu0 0
        %591 = vmatprep.subr.bf16.mxu0 0
        %592 = vmatpush2.bf16.msra.mxu0 0
        %593 = vmatprep.mubr.bf16.mxu0 0
        %594 = vmatmul.mubr.bf16.gmra.mxu0 %v559
        %v595 = vpop.f32.mrf.mxu0
        %v596 = vadd.f32 0.0, %v595
        %v597 = vpop.f32.mrf.mxu0
        %v598 = vpop.f32.mrf.mxu0
        %v599 = vpop.f32.mrf.mxu0
        %600 = vdwg.mxu0
        %v601 = vadd.f32 %v553, %v596
        %v602 = vxor.u32 %v601, 2147483648
        %v603 = vmul.f32 %v602, 1.442695
        %v604 = vpow.pop %v603
        %v605 = vadd.f32 %v604, 1.0
        %v606 = vrcp.pop %v605
        %v607 = vmul.f32 1.0, %v606
        %v608 = vtanh.pop %v601
        %v609 = vmul.f32 %v607, %v551
        %611 = vrot.lane.b32.xlu0 %v608, 64
        %v612 = vpop.permute.xlu0 %611
        %v614 = vmul.f32 %v607, %v612
        %616 = vrot.lane.b32.xlu0 %v614, 32
        %v617 = vpop.permute.xlu0 %616
        %v619 = vadd.f32 %v609, %v617
        %v620 = vtanh.pop %v619
        %622 = vrot.lane.b32.xlu0 %v620, 64
        %v623 = vpop.permute.xlu0 %622
        %v625 = vmul.f32 %v607, %v623
        %s626 = sadd.s32 %s294, 3
        %v627 = vstv %s626
        %vm628 = vcmp.lt.s32.totalorder %v627, %v293
        %v629 = vsel %vm628, %v625, %v550
        %v630 = vsel %vm628, %v619, %v551
        %s631 = scalar_lea.vmem %s269, 8
        %v632 = vld [vmem:[%s631] sm:$0x3]
        %v633 = vpack.c.bf16 %v629, %v629
        %635 = vrot.lane.b32.xlu0 %v633, 32
        %v636 = vpop.permute.xlu0 %635
        %v638 = vsel %vm313, %v636, 0
        %640 = vmatprep.subr.bf16.mxu0 0
        %641 = vmatpush1.bf16.msra.mxu0 0
        %642 = vmatprep.subr.bf16.mxu0 0
        %643 = vmatpush1.bf16.msra.mxu0 0
        %644 = vmatprep.subr.bf16.mxu0 0
        %645 = vmatpush1.bf16.msra.mxu0 0
        %646 = vmatprep.subr.bf16.mxu0 0
        %647 = vmatpush1.bf16.msra.mxu0 0
        %648 = vmatprep.subr.bf16.mxu0 0
        %649 = vmatpush1.bf16.msra.mxu0 0
        %650 = vmatprep.subr.bf16.mxu0 0
        %651 = vmatpush1.bf16.msra.mxu0 0
        %652 = vmatprep.subr.bf16.mxu0 0
        %653 = vmatpush1.bf16.msra.mxu0 %v310
        %654 = vmatprep.subr.bf16.mxu0 0
        %655 = vmatpush1.bf16.msra.mxu0 %v309
        %656 = vmatprep.subr.bf16.mxu0 0
        %657 = vmatpush2.bf16.msra.mxu0 0
        %658 = vmatprep.subr.bf16.mxu0 0
        %659 = vmatpush2.bf16.msra.mxu0 0
        %660 = vmatprep.subr.bf16.mxu0 0
        %661 = vmatpush2.bf16.msra.mxu0 0
        %662 = vmatprep.subr.bf16.mxu0 0
        %663 = vmatpush2.bf16.msra.mxu0 0
        %664 = vmatprep.subr.bf16.mxu0 0
        %665 = vmatpush2.bf16.msra.mxu0 0
        %666 = vmatprep.subr.bf16.mxu0 0
        %667 = vmatpush2.bf16.msra.mxu0 0
        %668 = vmatprep.subr.bf16.mxu0 0
        %669 = vmatpush2.bf16.msra.mxu0 0
        %670 = vmatprep.subr.bf16.mxu0 0
        %671 = vmatpush2.bf16.msra.mxu0 0
        %672 = vmatprep.mubr.bf16.mxu0 0
        %673 = vmatmul.mubr.bf16.gmra.mxu0 %v638
        %v674 = vpop.f32.mrf.mxu0
        %v675 = vadd.f32 0.0, %v674
        %v676 = vpop.f32.mrf.mxu0
        %v677 = vpop.f32.mrf.mxu0
        %v678 = vpop.f32.mrf.mxu0
        %679 = vdwg.mxu0
        %v680 = vadd.f32 %v632, %v675
        %v681 = vxor.u32 %v680, 2147483648
        %v682 = vmul.f32 %v681, 1.442695
        %v683 = vpow.pop %v682
        %v684 = vadd.f32 %v683, 1.0
        %v685 = vrcp.pop %v684
        %v686 = vmul.f32 1.0, %v685
        %v687 = vtanh.pop %v680
        %v688 = vmul.f32 %v686, %v630
        %690 = vrot.lane.b32.xlu0 %v687, 64
        %v691 = vpop.permute.xlu0 %690
        %v693 = vmul.f32 %v686, %v691
        %695 = vrot.lane.b32.xlu0 %v693, 32
        %v696 = vpop.permute.xlu0 %695
        %v698 = vadd.f32 %v688, %v696
        %v699 = vtanh.pop %v698
        %701 = vrot.lane.b32.xlu0 %v699, 64
        %v702 = vpop.permute.xlu0 %701
        %v704 = vmul.f32 %v686, %v702
        %s705 = sadd.s32 %s294, 4
        %v706 = vstv %s705
        %vm707 = vcmp.lt.s32.totalorder %v706, %v293
        %v708 = vsel %vm707, %v704, %v629
        %v709 = vsel %vm707, %v698, %v630
        %s710 = scalar_lea.vmem %s269, 10
        %v711 = vld [vmem:[%s710] sm:$0x3]
        %v712 = vpack.c.bf16 %v708, %v708
        %714 = vrot.lane.b32.xlu0 %v712, 32
        %v715 = vpop.permute.xlu0 %714
        %v717 = vsel %vm313, %v715, 0
        %719 = vmatprep.subr.bf16.mxu0 0
        %720 = vmatpush1.bf16.msra.mxu0 0
        %721 = vmatprep.subr.bf16.mxu0 0
        %722 = vmatpush1.bf16.msra.mxu0 0
        %723 = vmatprep.subr.bf16.mxu0 0
        %724 = vmatpush1.bf16.msra.mxu0 0
        %725 = vmatprep.subr.bf16.mxu0 0
        %726 = vmatpush1.bf16.msra.mxu0 0
        %727 = vmatprep.subr.bf16.mxu0 0
        %728 = vmatpush1.bf16.msra.mxu0 0
        %729 = vmatprep.subr.bf16.mxu0 0
        %730 = vmatpush1.bf16.msra.mxu0 0
        %731 = vmatprep.subr.bf16.mxu0 0
        %732 = vmatpush1.bf16.msra.mxu0 %v310
        %733 = vmatprep.subr.bf16.mxu0 0
        %734 = vmatpush1.bf16.msra.mxu0 %v309
        %735 = vmatprep.subr.bf16.mxu0 0
        %736 = vmatpush2.bf16.msra.mxu0 0
        %737 = vmatprep.subr.bf16.mxu0 0
        %738 = vmatpush2.bf16.msra.mxu0 0
        %739 = vmatprep.subr.bf16.mxu0 0
        %740 = vmatpush2.bf16.msra.mxu0 0
        %741 = vmatprep.subr.bf16.mxu0 0
        %742 = vmatpush2.bf16.msra.mxu0 0
        %743 = vmatprep.subr.bf16.mxu0 0
        %744 = vmatpush2.bf16.msra.mxu0 0
        %745 = vmatprep.subr.bf16.mxu0 0
        %746 = vmatpush2.bf16.msra.mxu0 0
        %747 = vmatprep.subr.bf16.mxu0 0
        %748 = vmatpush2.bf16.msra.mxu0 0
        %749 = vmatprep.subr.bf16.mxu0 0
        %750 = vmatpush2.bf16.msra.mxu0 0
        %751 = vmatprep.mubr.bf16.mxu0 0
        %752 = vmatmul.mubr.bf16.gmra.mxu0 %v717
        %v753 = vpop.f32.mrf.mxu0
        %v754 = vadd.f32 0.0, %v753
        %v755 = vpop.f32.mrf.mxu0
        %v756 = vpop.f32.mrf.mxu0
        %v757 = vpop.f32.mrf.mxu0
        %758 = vdwg.mxu0
        %v759 = vadd.f32 %v711, %v754
        %v760 = vxor.u32 %v759, 2147483648
        %v761 = vmul.f32 %v760, 1.442695
        %v762 = vpow.pop %v761
        %v763 = vadd.f32 %v762, 1.0
        %v764 = vrcp.pop %v763
        %v765 = vmul.f32 1.0, %v764
        %v766 = vtanh.pop %v759
        %v767 = vmul.f32 %v765, %v709
        %769 = vrot.lane.b32.xlu0 %v766, 64
        %v770 = vpop.permute.xlu0 %769
        %v772 = vmul.f32 %v765, %v770
        %774 = vrot.lane.b32.xlu0 %v772, 32
        %v775 = vpop.permute.xlu0 %774
        %v777 = vadd.f32 %v767, %v775
        %v778 = vtanh.pop %v777
        %780 = vrot.lane.b32.xlu0 %v778, 64
        %v781 = vpop.permute.xlu0 %780
        %v783 = vmul.f32 %v765, %v781
        %s784 = sadd.s32 %s294, 5
        %v785 = vstv %s784
        %vm786 = vcmp.lt.s32.totalorder %v785, %v293
        %v787 = vsel %vm786, %v783, %v708
        %v788 = vsel %vm786, %v777, %v709
        %s789 = scalar_lea.vmem %s269, 12
        %v790 = vld [vmem:[%s789] sm:$0x3]
        %v791 = vpack.c.bf16 %v787, %v787
        %793 = vrot.lane.b32.xlu0 %v791, 32
        %v794 = vpop.permute.xlu0 %793
        %v796 = vsel %vm313, %v794, 0
        %798 = vmatprep.subr.bf16.mxu0 0
        %799 = vmatpush1.bf16.msra.mxu0 0
        %800 = vmatprep.subr.bf16.mxu0 0
        %801 = vmatpush1.bf16.msra.mxu0 0
        %802 = vmatprep.subr.bf16.mxu0 0
        %803 = vmatpush1.bf16.msra.mxu0 0
        %804 = vmatprep.subr.bf16.mxu0 0
        %805 = vmatpush1.bf16.msra.mxu0 0
        %806 = vmatprep.subr.bf16.mxu0 0
        %807 = vmatpush1.bf16.msra.mxu0 0
        %808 = vmatprep.subr.bf16.mxu0 0
        %809 = vmatpush1.bf16.msra.mxu0 0
        %810 = vmatprep.subr.bf16.mxu0 0
        %811 = vmatpush1.bf16.msra.mxu0 %v310
        %812 = vmatprep.subr.bf16.mxu0 0
        %813 = vmatpush1.bf16.msra.mxu0 %v309
        %814 = vmatprep.subr.bf16.mxu0 0
        %815 = vmatpush2.bf16.msra.mxu0 0
        %816 = vmatprep.subr.bf16.mxu0 0
        %817 = vmatpush2.bf16.msra.mxu0 0
        %818 = vmatprep.subr.bf16.mxu0 0
        %819 = vmatpush2.bf16.msra.mxu0 0
        %820 = vmatprep.subr.bf16.mxu0 0
        %821 = vmatpush2.bf16.msra.mxu0 0
        %822 = vmatprep.subr.bf16.mxu0 0
        %823 = vmatpush2.bf16.msra.mxu0 0
        %824 = vmatprep.subr.bf16.mxu0 0
        %825 = vmatpush2.bf16.msra.mxu0 0
        %826 = vmatprep.subr.bf16.mxu0 0
        %827 = vmatpush2.bf16.msra.mxu0 0
        %828 = vmatprep.subr.bf16.mxu0 0
        %829 = vmatpush2.bf16.msra.mxu0 0
        %830 = vmatprep.mubr.bf16.mxu0 0
        %831 = vmatmul.mubr.bf16.gmra.mxu0 %v796
        %v832 = vpop.f32.mrf.mxu0
        %v833 = vadd.f32 0.0, %v832
        %v834 = vpop.f32.mrf.mxu0
        %v835 = vpop.f32.mrf.mxu0
        %v836 = vpop.f32.mrf.mxu0
        %837 = vdwg.mxu0
        %v838 = vadd.f32 %v790, %v833
        %v839 = vxor.u32 %v838, 2147483648
        %v840 = vmul.f32 %v839, 1.442695
        %v841 = vpow.pop %v840
        %v842 = vadd.f32 %v841, 1.0
        %v843 = vrcp.pop %v842
        %v844 = vmul.f32 1.0, %v843
        %v845 = vtanh.pop %v838
        %v846 = vmul.f32 %v844, %v788
        %848 = vrot.lane.b32.xlu0 %v845, 64
        %v849 = vpop.permute.xlu0 %848
        %v851 = vmul.f32 %v844, %v849
        %853 = vrot.lane.b32.xlu0 %v851, 32
        %v854 = vpop.permute.xlu0 %853
        %v856 = vadd.f32 %v846, %v854
        %v857 = vtanh.pop %v856
        %859 = vrot.lane.b32.xlu0 %v857, 64
        %v860 = vpop.permute.xlu0 %859
        %v862 = vmul.f32 %v844, %v860
        %s863 = sadd.s32 %s294, 6
        %v864 = vstv %s863
        %vm865 = vcmp.lt.s32.totalorder %v864, %v293
        %v866 = vsel %vm865, %v862, %v787
        %v867 = vsel %vm865, %v856, %v788
        %s868 = scalar_lea.vmem %s269, 14
        %v869 = vld [vmem:[%s868] sm:$0x3]
        %v870 = vpack.c.bf16 %v866, %v866
        %872 = vrot.lane.b32.xlu0 %v870, 32
        %v873 = vpop.permute.xlu0 %872
        %v875 = vsel %vm313, %v873, 0
        %877 = vmatprep.subr.bf16.mxu0 0
        %878 = vmatpush1.bf16.msra.mxu0 0
        %879 = vmatprep.subr.bf16.mxu0 0
        %880 = vmatpush1.bf16.msra.mxu0 0
        %881 = vmatprep.subr.bf16.mxu0 0
        %882 = vmatpush1.bf16.msra.mxu0 0
        %883 = vmatprep.subr.bf16.mxu0 0
        %884 = vmatpush1.bf16.msra.mxu0 0
        %885 = vmatprep.subr.bf16.mxu0 0
        %886 = vmatpush1.bf16.msra.mxu0 0
        %887 = vmatprep.subr.bf16.mxu0 0
        %888 = vmatpush1.bf16.msra.mxu0 0
        %889 = vmatprep.subr.bf16.mxu0 0
        %890 = vmatpush1.bf16.msra.mxu0 %v310
        %891 = vmatprep.subr.bf16.mxu0 0
        %892 = vmatpush1.bf16.msra.mxu0 %v309
        %893 = vmatprep.subr.bf16.mxu0 0
        %894 = vmatpush2.bf16.msra.mxu0 0
        %895 = vmatprep.subr.bf16.mxu0 0
        %896 = vmatpush2.bf16.msra.mxu0 0
        %897 = vmatprep.subr.bf16.mxu0 0
        %898 = vmatpush2.bf16.msra.mxu0 0
        %899 = vmatprep.subr.bf16.mxu0 0
        %900 = vmatpush2.bf16.msra.mxu0 0
        %901 = vmatprep.subr.bf16.mxu0 0
        %902 = vmatpush2.bf16.msra.mxu0 0
        %903 = vmatprep.subr.bf16.mxu0 0
        %904 = vmatpush2.bf16.msra.mxu0 0
        %905 = vmatprep.subr.bf16.mxu0 0
        %906 = vmatpush2.bf16.msra.mxu0 0
        %907 = vmatprep.subr.bf16.mxu0 0
        %908 = vmatpush2.bf16.msra.mxu0 0
        %909 = vmatprep.mubr.bf16.mxu0 0
        %910 = vmatmul.mubr.bf16.gmra.mxu0 %v875
        %v911 = vpop.f32.mrf.mxu0
        %v912 = vadd.f32 0.0, %v911
        %v913 = vpop.f32.mrf.mxu0
        %v914 = vpop.f32.mrf.mxu0
        %v915 = vpop.f32.mrf.mxu0
        %916 = vdwg.mxu0
        %v917 = vadd.f32 %v869, %v912
        %v918 = vxor.u32 %v917, 2147483648
        %v919 = vmul.f32 %v918, 1.442695
        %v920 = vpow.pop %v919
        %v921 = vadd.f32 %v920, 1.0
        %v922 = vrcp.pop %v921
        %v923 = vmul.f32 1.0, %v922
        %v924 = vtanh.pop %v917
        %v925 = vmul.f32 %v923, %v867
        %927 = vrot.lane.b32.xlu0 %v924, 64
        %v928 = vpop.permute.xlu0 %927
        %v930 = vmul.f32 %v923, %v928
        %932 = vrot.lane.b32.xlu0 %v930, 32
        %v933 = vpop.permute.xlu0 %932
        %v935 = vadd.f32 %v925, %v933
        %v936 = vtanh.pop %v935
        %938 = vrot.lane.b32.xlu0 %v936, 64
        %v939 = vpop.permute.xlu0 %938
        %v941 = vmul.f32 %v923, %v939
        %s942 = sadd.s32 %s294, 7
        %v943 = vstv %s942
        %vm944 = vcmp.lt.s32.totalorder %v943, %v293
        %v945 = vsel %vm944, %v941, %v866
        %v946 = vsel %vm944, %v935, %v867
        %948 = vrot.lane.b32.xlu0 %v945, 32
        %v949 = vpop.permute.xlu0 %948
        %vm951 = vcmask 254976
        %952 = vst.msk [vmem:[%s296] sm:$0x3] %vm951, %v949
        %954 = vrot.lane.b32.xlu0 %v946, 96
        %v955 = vpop.permute.xlu0 %954
        %957 = vst.msk [vmem:[#allocation2] sm:$0x3] %vm951, %v955
        %p958 = scmp.eq.s32.totalorder %s21, 1
        %p959 = pnand %p958, %p277
        %p960 = pneg %p959
        // Predicated region
        $region45: #{td_lstm_forward.1} parent=39 // pred_check
          _
        $region46: #{td_lstm_forward.1} parent=39 // pred_check_branch
          %962 = sbr.rel (%p959) target = $region48
        $region47: #{td_lstm_forward.1} parent=39 // pred_region
          %v963 = vld [vmem:[#allocation3] sm:$0x3]
          %s964 = scalar_lea.vmem [#allocation3], 2
          %v965 = vld [vmem:[%s964] sm:$0x3]
          %967 = vrot.lane.b32.xlu0 %v965, 32
          %v968 = vpop.permute.xlu0 %967
          %v970 = vsel %vm313, %v963, %v968
          %v971 = vld [vmem:[%s3] sm:$0xff]
          %v972 = vld [vmem:[%s3 + $0x8] sm:$0xff]
          %v973 = vld [vmem:[%s3 + $0x10] sm:$0xff]
          %v974 = vld [vmem:[%s3 + $0x18] sm:$0xff]
          %v975 = vld [vmem:[%s3 + $0x20] sm:$0xff]
          %v976 = vld [vmem:[%s3 + $0x28] sm:$0xff]
          %v977 = vld [vmem:[%s3 + $0x30] sm:$0xff]
          %v978 = vld [vmem:[%s3 + $0x38] sm:$0xff]
          %v979 = vld [vmem:[%s4] sm:$0x1]
          %v981 = vlaneseq
          %v982 = vshrl.u32 %v981, 7
          %v983 = vsub.s32 0, %v982
          %v984 = vrot.slane %v979, %v983
          %vm986 = vcmask 523264
          %v988 = vsel %vm986, %v970, 0
          %990 = vmatprep.subr.mxu0 0.0
          %991 = vmatpush1.msra.mxu0 0.0
          %992 = vmatprep.subr.mxu0 0.0
          %993 = vmatpush1.msra.mxu0 0.0
          %994 = vmatprep.subr.mxu0 0.0
          %995 = vmatpush1.msra.mxu0 0.0
          %996 = vmatprep.subr.mxu0 0.0
          %997 = vmatpush1.msra.mxu0 0.0
          %998 = vmatprep.subr.mxu0 0.0
          %999 = vmatpush1.msra.mxu0 0.0
          %1000 = vmatprep.subr.mxu0 0.0
          %1001 = vmatpush1.msra.mxu0 0.0
          %1002 = vmatprep.subr.mxu0 0.0
          %1003 = vmatpush1.msra.mxu0 0.0
          %1004 = vmatprep.subr.mxu0 0.0
          %1005 = vmatpush1.msra.mxu0 0.0
          %1006 = vmatprep.subr.mxu0 0.0
          %1007 = vmatpush1.msra.mxu0 %v978
          %1008 = vmatprep.subr.mxu0 0.0
          %1009 = vmatpush1.msra.mxu0 %v977
          %1010 = vmatprep.subr.mxu0 0.0
          %1011 = vmatpush1.msra.mxu0 %v976
          %1012 = vmatprep.subr.mxu0 0.0
          %1013 = vmatpush1.msra.mxu0 %v975
          %1014 = vmatprep.subr.mxu0 0.0
          %1015 = vmatpush1.msra.mxu0 %v974
          %1016 = vmatprep.subr.mxu0 0.0
          %1017 = vmatpush1.msra.mxu0 %v973
          %1018 = vmatprep.subr.mxu0 0.0
          %1019 = vmatpush1.msra.mxu0 %v972
          %1020 = vmatprep.subr.mxu0 0.0
          %1021 = vmatpush1.msra.mxu0 %v971
          %1022 = vmatprep.subr.mxu0 0.0
          %1023 = vmatpush2.msra.mxu0 0.0
          %1024 = vmatprep.subr.mxu0 0.0
          %1025 = vmatpush2.msra.mxu0 0.0
          %1026 = vmatprep.subr.mxu0 0.0
          %1027 = vmatpush2.msra.mxu0 0.0
          %1028 = vmatprep.subr.mxu0 0.0
          %1029 = vmatpush2.msra.mxu0 0.0
          %1030 = vmatprep.subr.mxu0 0.0
          %1031 = vmatpush2.msra.mxu0 0.0
          %1032 = vmatprep.subr.mxu0 0.0
          %1033 = vmatpush2.msra.mxu0 0.0
          %1034 = vmatprep.subr.mxu0 0.0
          %1035 = vmatpush2.msra.mxu0 0.0
          %1036 = vmatprep.subr.mxu0 0.0
          %1037 = vmatpush2.msra.mxu0 0.0
          %1038 = vmatprep.subr.mxu0 0.0
          %1039 = vmatpush2.msra.mxu0 0.0
          %1040 = vmatprep.subr.mxu0 0.0
          %1041 = vmatpush2.msra.mxu0 0.0
          %1042 = vmatprep.subr.mxu0 0.0
          %1043 = vmatpush2.msra.mxu0 0.0
          %1044 = vmatprep.subr.mxu0 0.0
          %1045 = vmatpush2.msra.mxu0 0.0
          %1046 = vmatprep.subr.mxu0 0.0
          %1047 = vmatpush2.msra.mxu0 0.0
          %1048 = vmatprep.subr.mxu0 0.0
          %1049 = vmatpush2.msra.mxu0 0.0
          %1050 = vmatprep.subr.mxu0 0.0
          %1051 = vmatpush2.msra.mxu0 0.0
          %1052 = vmatprep.subr.mxu0 0.0
          %1053 = vmatpush2.msra.mxu0 0.0
          %1054 = vmatprep.mubr.f32.mxu0 0.0
          %1055 = vmatmul.mubr.f32.gmra.mxu0 %v988
          %v1056 = vpop.f32.mrf.mxu0
          %v1057 = vadd.f32 %v984, %v1056
          %v1058 = vpop.f32.mrf.mxu0
          %1059 = vdwg.mxu0
          %vm1060 = vcmask 17408
          %v1061 = vsel %vm1060, %v1057, -inf
          %1062 = vmax.xlane.f32.xlu0 %v1061
          %v1063 = vpop.xlane.xlu0 %1062
          %v1064 = vsub.f32 %v1057, %v1063
          %v1065 = vmul.f32 %v1064, 1.442695
          %v1066 = vpow.pop %v1065
          %v1067 = vsel %vm1060, %v1066, 0.0
          %1068 = vadd.xlane.f32.xlu0 %v1067
          %v1069 = vpop.xlane.xlu0 %1068
          %v1070 = vrcp.pop %v1069
          %v1071 = vmul.f32 %v1066, %v1070
          %1072 = vst.msk [vmem:[#allocation4] sm:$0x3] %vm1060, %v1071
        $region48: #{td_lstm_forward.1} parent=39 // pred_fallthru
          _
        // Predicated region
        $region49: #{td_lstm_forward.1} parent=39 // pred_check
          %p1073 = pneg %p164
        $region50: #{td_lstm_forward.1} parent=39 // pred_check_branch
          %1075 = sbr.rel (%p1073) target = $region52
        $region51: #{td_lstm_forward.1} parent=39 // pred_region
          %s1077 = ssub.s32 32, 32
          %1078 = vsyncadd [#allocation5], %s1077
          %s1080 = sshll.u32 [#allocation4], 4
          %s1081 = int_to_ptr.vmem [resolvable:$true] %s1080
          %1083 = dma.vmem_to_hbm [thread:$0]  %s1081, 32, %s5, [#allocation5]
        $region52: #{td_lstm_forward.1} parent=39 // pred_fallthru
          _
        // Predicated region
        $region53: #{td_lstm_forward.1} parent=39 // pred_check
          %p1084 = pneg %p164
        $region54: #{td_lstm_forward.1} parent=39 // pred_check_branch
          %1086 = sbr.rel (%p1084) target = $region56
        $region55: #{td_lstm_forward.1} parent=39 // pred_region
          %1087 = dma.done [#allocation5], 32
        $region56: #{td_lstm_forward.1} parent=39 // pred_fallthru
          _
      $region40: #{td_lstm_forward.1} parent=5 // pred_fallthru
        _
      %p1088 = scmp.le.s32.totalorder 2, %s12
      // Predicated region
      $region57: #{td_lstm_forward.1} parent=5 // pred_check
        %p1089 = pneg %p1088
      $region58: #{td_lstm_forward.1} parent=5 // pred_check_branch
        %1091 = sbr.rel (%p1089) target = $region60
      $region59: #{td_lstm_forward.1} parent=5 // pred_region
        %s1092 = ssub.s32 %s12, 2
      $region60: #{td_lstm_forward.1} parent=5 // pred_fallthru
        _
    $region6: #{td_lstm_forward.1} parent=1 // loop_footer
      %s16 = sadd.s32 1, %s12
    $region7: #{td_lstm_forward.1} parent=1 // loop_footer_branch
      %11 = sbr.rel target = $region3
    $region8: #{td_lstm_forward.1} parent=1 // loop_exit
      _
    %1093 = vsyncpa [#allocation5], 1
    %s1094 = scalar_lea.sflag [#allocation5], 1
    %1095 = vsyncpa %s1094, 1

</llo_original>
